<compile_context>
chip_gen: v7x
topology: tpu7x:2x2x1
jax: 0.10.0
libtpu: 0.0.40
codegen_flags: <defaults>
</compile_context>

<pallas_src>
import functools

import numpy as np

import jax
import jax.numpy as jnp
from jax.experimental import pallas as pl
from jax.experimental.pallas import tpu as pltpu


# bf16 MXU inputs (f32 accumulation) roughly double matmul throughput on
# v5e/v6e/v7x and halve VMEM/vreg pressure; adjacency is 0/1 so it casts exactly.
_MXU_DTYPE = jnp.bfloat16   # set to jnp.float32 for bit-exact f32 GNN matmuls


def _fused_forward_kernel(adj_ref, emb_ref, gnn_w_ref, w1_ref, b1_ref,
                          w2_row_ref, b2_ref, aff_ref, *, num_layers, N, M):
    """One graph per grid step: L message-passing layers + edge regression."""
    adj = adj_ref[0]                              # (V, V), MXU dtype (0/1 -> exact)
    emb = emb_ref[0].astype(_MXU_DTYPE)           # (V, F), carried in bf16

    def _layer(l, emb_bf):
        w = gnn_w_ref[l]                          # (F_in, F_out), pre-transposed
        # message_func + fc (no bias) + per-message ReLU:  relu(emb @ W^T)
        msg = jnp.maximum(
            jnp.dot(emb_bf, w, preferred_element_type=jnp.float32), 0.0)
        # reduce_func: sum over incoming sources == A[dst, src] @ msg,
        # followed by MessagePassingOp's outer ReLU.
        new = jnp.maximum(
            jnp.dot(adj, msg.astype(adj.dtype),
                    preferred_element_type=jnp.float32), 0.0)
        # ReLU commutes with the downcast: values fed to the next MXU op are
        # identical to an f32 carry + cast-at-entry.
        return new.astype(emb_bf.dtype)

    # First L-1 layers: bf16 carry; fori_loop + dynamic weight indexing bounds
    # the live range of each 256x256 weight slab.
    emb = jax.lax.fori_loop(0, num_layers - 1, _layer, emb, unroll=True)

    # Last layer: keep the f32 result for the edge regressor (accuracy).
    w_last = gnn_w_ref[num_layers - 1]
    msg = jnp.maximum(
        jnp.dot(emb, w_last, preferred_element_type=jnp.float32), 0.0)
    emb_f32 = jnp.maximum(
        jnp.dot(adj, msg.astype(adj.dtype),
                preferred_element_type=jnp.float32), 0.0)        # (V, F) f32

    # ---- edge regression on the FINAL embeddings only (mode='test'), all f32 ----
    det = emb_f32[:N]                             # (N, F) detections
    trk = emb_f32[N:N + M]                        # (M, F) tracks
    w1 = w1_ref[...]                              # (F, H) f32
    det_h = jnp.dot(det, w1, preferred_element_type=jnp.float32)
    trk_h = jnp.dot(trk, w1, preferred_element_type=jnp.float32)
    # Linear1 is linear: (trk - det) @ W1 == trk@W1 - det@W1  -> (N, M, H)
    h = jnp.maximum(trk_h[None, :, :] - det_h[:, None, :] + b1_ref[...], 0.0)
    # Linear2 (H -> 1) as a VPU multiply + lane reduction (no 1-column MXU op).
    aff = jnp.sum(h * w2_row_ref[...], axis=-1) + b2_ref[0, 0]   # (N, M)
    # TODO(synk): when M grows to hundreds of tracks, pad the output's last dim
    # to a multiple of 128 (lane-dense out_spec -> unmasked vst, dense writeback
    # DMA) and slice in the wrapper; at M=8 the masked store is negligible.
    aff_ref[0] = aff.astype(aff_ref.dtype)


@functools.partial(jax.jit, static_argnums=(2, 3))
def message_passing_op_forward(adj, embeddings, N, M, params):
    """MessagePassingOp.forward in mode='test' (returns pred_aff_mat only).

    Accepts one graph (adj (V,V), embeddings (V,F)) or a batch of graphs
    (adj (B,V,V), embeddings (B,V,F)); per-graph math matches the module.
    """
    # TODO(synk): AffinityLoss / TripletLoss are not defined in the reference
    # source; train-mode loss accumulation is skipped (mode='test').
    single = adj.ndim == 2
    if single:
        adj = adj[None]
        embeddings = embeddings[None]
    B, V, F = embeddings.shape
    _, H = params["er_w1"].shape
    L = len(params["gnn_weights"])
    mxu = _MXU_DTYPE

    # Pre-transpose torch-layout (out,in) weights to (in,out): the MXU then
    # contracts a natural-layout RHS and never needs an in-kernel transpose.
    # TODO(synk): jnp.stack assumes every GNN layer is (F, F); varying layer
    # widths would need per-layer weight inputs.
    gnn_w = jnp.stack([w.T for w in params["gnn_weights"]]).astype(mxu)  # (L,F,F)
    # TODO(synk): adjacency->bf16 is exact only for 0/1 entries; revisit the
    # cast if a weighted adjacency is ever used.
    adj_c = adj.astype(mxu)
    w1 = params["er_w1"].astype(jnp.float32)                   # (F, H), f32 regressor
    b1 = params["er_b1"].reshape(1, H).astype(jnp.float32)
    w2_row = params["er_w2"].reshape(1, H).astype(jnp.float32)
    b2 = params["er_b2"].reshape(1, 1).astype(jnp.float32)

    kernel = functools.partial(_fused_forward_kernel, num_layers=L, N=N, M=M)

    # Grid over graphs; weight index_maps return block (0,...) so the weights
    # are DMA'd once per call and stay VMEM-resident, while per-graph adj/emb
    # blocks (~50 KiB) are pipelined by BlockSpec. Working set << scoped-VMEM
    # defaults on all generations (v7x included).
    # TODO(synk): for large graphs (V >~ 2k) the dense (V,V) adjacency must be
    # row-tiled with an extra grid axis; size those tiles from v7x's 64 MiB
    # physical / 32 MiB default scoped VMEM (set vmem_limit_bytes explicitly),
    # remembering BlockSpec double-buffers each input.
    # TODO(synk): if this op runs once per frame with fixed weights, a
    # cross-call weight prefetch (side pallas_call starting the DMA, consumed
    # here via a semaphore) would take the weight fetch off the per-frame path.
    out = pl.pallas_call(
        kernel,
        out_shape=jax.ShapeDtypeStruct((B, N, M), jnp.float32),
        grid=(B,),
        in_specs=[
            pl.BlockSpec((1, V, V), lambda b: (b, 0, 0)),     # adj, per graph
            pl.BlockSpec((1, V, F), lambda b: (b, 0, 0)),     # emb, per graph
            pl.BlockSpec((L, F, F), lambda b: (0, 0, 0)),     # GNN weights, resident
            pl.BlockSpec((F, H), lambda b: (0, 0)),           # edge-regr W1
            pl.BlockSpec((1, H), lambda b: (0, 0)),           # edge-regr b1
            pl.BlockSpec((1, H), lambda b: (0, 0)),           # edge-regr W2 row
            pl.BlockSpec((1, 1), lambda b: (0, 0)),           # edge-regr b2
        ],
        out_specs=pl.BlockSpec((1, N, M), lambda b: (b, 0, 0)),
        compiler_params=pltpu.CompilerParams(
            dimension_semantics=("parallel",)),               # 2nd TC on v7x
    )(adj_c, embeddings, gnn_w, w1, b1, w2_row, b2)
    return out[0] if single else out


def _reference_forward_single(adj, emb, N, M, params, mxu_dtype):
    """Pure-JAX reference following the literal PyTorch composition order."""
    a = adj.astype(mxu_dtype)
    x = emb
    for w in params["gnn_weights"]:
        msg = jnp.maximum(
            jnp.dot(x.astype(mxu_dtype), w.T.astype(mxu_dtype),
                    preferred_element_type=jnp.float32), 0.0)
        x = jnp.maximum(
            jnp.dot(a, msg.astype(mxu_dtype), preferred_element_type=jnp.float32),
            0.0)
    det, trk = x[:N], x[N:N + M]
    diff = (trk[None, :, :] - det[:, None, :]).reshape(N * M, -1)
    h = jnp.maximum(
        jnp.dot(diff, params["er_w1"], preferred_element_type=jnp.float32)
        + params["er_b1"], 0.0)
    out = jnp.dot(h, params["er_w2"],
                  preferred_element_type=jnp.float32) + params["er_b2"]
    return out.reshape(N, M)


if __name__ == "__main__":
    key = jax.random.PRNGKey(0)
    B = 4                    # graphs per pallas_call (batched grid axis)
    N, M = 8, 8              # detections / tracks per graph
    V = N + M                # graph nodes
    F = 256                  # feature_size (_regress_aff_mat hard-codes 256)
    H = 128                  # edge-regressor hidden width
    L = 4                    # num_gnn_layers

    keys = jax.random.split(key, 3 + L)
    emb_b = jax.random.normal(keys[0], (B, V, F), dtype=jnp.float32)

    # Deterministic sparse bipartite tracking graphs: in graph b, detection i
    # connects to tracks {i+b, i+b+1, i+b+2} (mod M); adj[dst, src] = 1.
    adj_np = np.zeros((B, V, V), dtype=np.float32)
    for b in range(B):
        for i in range(N):
            for k in range(3):
                j = (i + b + k) % M
                adj_np[b, i, N + j] = 1.0      # track j     -> detection i
                adj_np[b, N + j, i] = 1.0      # detection i -> track j
    adj_b = jnp.asarray(adj_np)

    # xavier_normal_ with gain=calculate_gain('relu')=sqrt(2), torch (out,in) layout.
    gain = jnp.sqrt(2.0)
    xavier_std = gain * jnp.sqrt(2.0 / (F + F))
    gnn_weights = [xavier_std * jax.random.normal(keys[1 + i], (F, F), jnp.float32)
                   for i in range(L)]

    # TODO(synk): edge_regression config / EDGE_REGRESSORS registry not provided;
    # implemented as a deterministic 2-layer MLP Linear(F,H)-ReLU-Linear(H,1).
    er_w1 = 0.05 * jax.random.normal(keys[1 + L], (F, H), jnp.float32)
    er_b1 = jnp.zeros((1, H), jnp.float32)
    er_w2 = 0.05 * jax.random.normal(keys[2 + L], (H, 1), jnp.float32)
    er_b2 = jnp.zeros((1, 1), jnp.float32)

    params = dict(gnn_weights=gnn_weights,
                  er_w1=er_w1, er_b1=er_b1, er_w2=er_w2, er_b2=er_b2)

    # Batched forward: one pallas_call, grid over graphs.
    pred = message_passing_op_forward(adj_b, emb_b, N, M, params)
    jax.block_until_ready(pred)
    assert pred.shape == (B, N, M), pred.shape
    assert bool(jnp.all(jnp.isfinite(pred)))

    # Cross-check against a pure-JAX reference (literal PyTorch composition).
    # The edge regressor is now f32 in the kernel, so the tolerance is 1%
    # (tightened from the previous 5%); residual diff comes from the bf16 GNN
    # inputs and the f32 linearity split of Linear1.
    ref = jnp.stack([_reference_forward_single(adj_b[b], emb_b[b], N, M,
                                               params, _MXU_DTYPE)
                     for b in range(B)])
    jax.block_until_ready(ref)
    scale = float(jnp.maximum(jnp.max(jnp.abs(ref)), 1.0))
    max_err = float(jnp.max(jnp.abs(pred - ref)))
    assert max_err <= 0.01 * scale, (max_err, scale)

    # Single-graph (module-signature-equivalent) path uses the same kernel.
    pred0 = message_passing_op_forward(adj_b[0], emb_b[0], N, M, params)
    jax.block_until_ready(pred0)
    assert pred0.shape == (N, M), pred0.shape
    assert float(jnp.max(jnp.abs(pred0 - pred[0]))) <= 1e-3 * scale

    print("KERNEL_OK")
</pallas_src>

<mosaic_0001>
module attributes {stable_mosaic.version = 11 : i64} {
  func.func @_fused_forward_kernel(%arg0: i32, %arg1: memref<1x16x16xbf16, #tpu.memory_space<vmem>>, %arg2: memref<1x16x256xf32, #tpu.memory_space<vmem>>, %arg3: memref<4x256x256xbf16, #tpu.memory_space<vmem>>, %arg4: memref<256x128xf32, #tpu.memory_space<vmem>>, %arg5: memref<1x128xf32, #tpu.memory_space<vmem>>, %arg6: memref<1x128xf32, #tpu.memory_space<vmem>>, %arg7: memref<1x1xf32, #tpu.memory_space<vmem>>, %arg8: memref<1x8x8xf32, #tpu.memory_space<vmem>>) attributes {dimension_semantics = [#tpu.dimension_semantics<parallel>], iteration_bounds = array<i64: 4>, scalar_prefetch = 0 : i64, scratch_operands = 0 : i64, tpu.core_type = #tpu.core_type<tc>, window_params = [{transform_indices = @transform_0, window_bounds = array<i64: 1, 16, 16>}, {transform_indices = @transform_1, window_bounds = array<i64: 1, 16, 256>}, {pipeline_mode = #tpu.pipeline_mode<synchronous>, transform_indices = @transform_2, window_bounds = array<i64: 4, 256, 256>}, {pipeline_mode = #tpu.pipeline_mode<synchronous>, transform_indices = @transform_3, window_bounds = array<i64: 256, 128>}, {pipeline_mode = #tpu.pipeline_mode<synchronous>, transform_indices = @transform_4, window_bounds = array<i64: 1, 128>}, {pipeline_mode = #tpu.pipeline_mode<synchronous>, transform_indices = @transform_5, window_bounds = array<i64: 1, 128>}, {pipeline_mode = #tpu.pipeline_mode<synchronous>, transform_indices = @transform_6, window_bounds = array<i64: 1, 1>}, {transform_indices = @transform_7, window_bounds = array<i64: 1, 8, 8>}]} {
    %c0 = arith.constant 0 : index
    %c0_0 = arith.constant 0 : index
    %c0_1 = arith.constant 0 : index
    %0 = vector.load %arg1[%c0, %c0_0, %c0_1] : memref<1x16x16xbf16, #tpu.memory_space<vmem>>, vector<1x16x16xbf16>
    %1 = vector.shape_cast %0 : vector<1x16x16xbf16> to vector<16x16xbf16>
    %c0_2 = arith.constant 0 : index
    %c0_3 = arith.constant 0 : index
    %c0_4 = arith.constant 0 : index
    %2 = vector.load %arg2[%c0_2, %c0_3, %c0_4] : memref<1x16x256xf32, #tpu.memory_space<vmem>>, vector<1x16x256xf32>
    %3 = vector.shape_cast %2 : vector<1x16x256xf32> to vector<16x256xf32>
    %4 = arith.truncf %3 : vector<16x256xf32> to vector<16x256xbf16>
    %c0_i32 = arith.constant 0 : i32
    %5 = arith.index_cast %c0_i32 : i32 to index
    %c0_5 = arith.constant 0 : index
    %c0_6 = arith.constant 0 : index
    %6 = vector.load %arg3[%5, %c0_5, %c0_6] : memref<4x256x256xbf16, #tpu.memory_space<vmem>>, vector<1x256x256xbf16>
    %7 = vector.shape_cast %6 : vector<1x256x256xbf16> to vector<256x256xbf16>
    %cst = arith.constant dense<0.000000e+00> : vector<16x256xf32>
    %8 = tpu.matmul %4, %7, %cst {dimension_numbers = #tpu.dot_dimension_numbers<[1], [0], [0], [1], [0, 0, 1, 1], [], []>} : vector<16x256xbf16>, vector<256x256xbf16>, vector<16x256xf32> -> vector<16x256xf32>
    %cst_7 = arith.constant 0.000000e+00 : f32
    %9 = vector.broadcast %cst_7 : f32 to vector<16x256xf32>
    %10 = arith.maximumf %8, %9 : vector<16x256xf32>
    %11 = arith.truncf %10 : vector<16x256xf32> to vector<16x256xbf16>
    %cst_8 = arith.constant dense<0.000000e+00> : vector<16x256xf32>
    %12 = tpu.matmul %1, %11, %cst_8 {dimension_numbers = #tpu.dot_dimension_numbers<[1], [0], [0], [1], [0, 0, 1, 1], [], []>} : vector<16x16xbf16>, vector<16x256xbf16>, vector<16x256xf32> -> vector<16x256xf32>
    %cst_9 = arith.constant 0.000000e+00 : f32
    %13 = vector.broadcast %cst_9 : f32 to vector<16x256xf32>
    %14 = arith.maximumf %12, %13 : vector<16x256xf32>
    %15 = arith.truncf %14 : vector<16x256xf32> to vector<16x256xbf16>
    %c1_i32 = arith.constant 1 : i32
    %16 = arith.index_cast %c1_i32 : i32 to index
    %c0_10 = arith.constant 0 : index
    %c0_11 = arith.constant 0 : index
    %17 = vector.load %arg3[%16, %c0_10, %c0_11] : memref<4x256x256xbf16, #tpu.memory_space<vmem>>, vector<1x256x256xbf16>
    %18 = vector.shape_cast %17 : vector<1x256x256xbf16> to vector<256x256xbf16>
    %cst_12 = arith.constant dense<0.000000e+00> : vector<16x256xf32>
    %19 = tpu.matmul %15, %18, %cst_12 {dimension_numbers = #tpu.dot_dimension_numbers<[1], [0], [0], [1], [0, 0, 1, 1], [], []>} : vector<16x256xbf16>, vector<256x256xbf16>, vector<16x256xf32> -> vector<16x256xf32>
    %cst_13 = arith.constant 0.000000e+00 : f32
    %20 = vector.broadcast %cst_13 : f32 to vector<16x256xf32>
    %21 = arith.maximumf %19, %20 : vector<16x256xf32>
    %22 = arith.truncf %21 : vector<16x256xf32> to vector<16x256xbf16>
    %cst_14 = arith.constant dense<0.000000e+00> : vector<16x256xf32>
    %23 = tpu.matmul %1, %22, %cst_14 {dimension_numbers = #tpu.dot_dimension_numbers<[1], [0], [0], [1], [0, 0, 1, 1], [], []>} : vector<16x16xbf16>, vector<16x256xbf16>, vector<16x256xf32> -> vector<16x256xf32>
    %cst_15 = arith.constant 0.000000e+00 : f32
    %24 = vector.broadcast %cst_15 : f32 to vector<16x256xf32>
    %25 = arith.maximumf %23, %24 : vector<16x256xf32>
    %26 = arith.truncf %25 : vector<16x256xf32> to vector<16x256xbf16>
    %c2_i32 = arith.constant 2 : i32
    %27 = arith.index_cast %c2_i32 : i32 to index
    %c0_16 = arith.constant 0 : index
    %c0_17 = arith.constant 0 : index
    %28 = vector.load %arg3[%27, %c0_16, %c0_17] : memref<4x256x256xbf16, #tpu.memory_space<vmem>>, vector<1x256x256xbf16>
    %29 = vector.shape_cast %28 : vector<1x256x256xbf16> to vector<256x256xbf16>
    %cst_18 = arith.constant dense<0.000000e+00> : vector<16x256xf32>
    %30 = tpu.matmul %26, %29, %cst_18 {dimension_numbers = #tpu.dot_dimension_numbers<[1], [0], [0], [1], [0, 0, 1, 1], [], []>} : vector<16x256xbf16>, vector<256x256xbf16>, vector<16x256xf32> -> vector<16x256xf32>
    %cst_19 = arith.constant 0.000000e+00 : f32
    %31 = vector.broadcast %cst_19 : f32 to vector<16x256xf32>
    %32 = arith.maximumf %30, %31 : vector<16x256xf32>
    %33 = arith.truncf %32 : vector<16x256xf32> to vector<16x256xbf16>
    %cst_20 = arith.constant dense<0.000000e+00> : vector<16x256xf32>
    %34 = tpu.matmul %1, %33, %cst_20 {dimension_numbers = #tpu.dot_dimension_numbers<[1], [0], [0], [1], [0, 0, 1, 1], [], []>} : vector<16x16xbf16>, vector<16x256xbf16>, vector<16x256xf32> -> vector<16x256xf32>
    %cst_21 = arith.constant 0.000000e+00 : f32
    %35 = vector.broadcast %cst_21 : f32 to vector<16x256xf32>
    %36 = arith.maximumf %34, %35 : vector<16x256xf32>
    %37 = arith.truncf %36 : vector<16x256xf32> to vector<16x256xbf16>
    %c3_i32 = arith.constant 3 : i32
    %c3 = arith.constant 3 : index
    %c0_22 = arith.constant 0 : index
    %c0_23 = arith.constant 0 : index
    %38 = vector.load %arg3[%c3, %c0_22, %c0_23] : memref<4x256x256xbf16, #tpu.memory_space<vmem>>, vector<1x256x256xbf16>
    %39 = vector.shape_cast %38 : vector<1x256x256xbf16> to vector<256x256xbf16>
    %cst_24 = arith.constant dense<0.000000e+00> : vector<16x256xf32>
    %40 = tpu.matmul %37, %39, %cst_24 {dimension_numbers = #tpu.dot_dimension_numbers<[1], [0], [0], [1], [0, 0, 1, 1], [], []>} : vector<16x256xbf16>, vector<256x256xbf16>, vector<16x256xf32> -> vector<16x256xf32>
    %cst_25 = arith.constant 0.000000e+00 : f32
    %41 = vector.broadcast %cst_25 : f32 to vector<16x256xf32>
    %42 = arith.maximumf %40, %41 : vector<16x256xf32>
    %43 = arith.truncf %42 : vector<16x256xf32> to vector<16x256xbf16>
    %cst_26 = arith.constant dense<0.000000e+00> : vector<16x256xf32>
    %44 = tpu.matmul %1, %43, %cst_26 {dimension_numbers = #tpu.dot_dimension_numbers<[1], [0], [0], [1], [0, 0, 1, 1], [], []>} : vector<16x16xbf16>, vector<16x256xbf16>, vector<16x256xf32> -> vector<16x256xf32>
    %cst_27 = arith.constant 0.000000e+00 : f32
    %45 = vector.broadcast %cst_27 : f32 to vector<16x256xf32>
    %46 = arith.maximumf %44, %45 : vector<16x256xf32>
    %47 = vector.extract_strided_slice %46 {offsets = [0, 0], sizes = [8, 256], strides = [1, 1]} : vector<16x256xf32> to vector<8x256xf32>
    %48 = vector.extract_strided_slice %46 {offsets = [8, 0], sizes = [8, 256], strides = [1, 1]} : vector<16x256xf32> to vector<8x256xf32>
    %c0_28 = arith.constant 0 : index
    %c0_29 = arith.constant 0 : index
    %49 = vector.load %arg4[%c0_28, %c0_29] : memref<256x128xf32, #tpu.memory_space<vmem>>, vector<256x128xf32>
    %cst_30 = arith.constant dense<0.000000e+00> : vector<8x128xf32>
    %50 = tpu.matmul %47, %49, %cst_30 {dimension_numbers = #tpu.dot_dimension_numbers<[1], [0], [0], [1], [0, 0, 1, 1], [], []>} : vector<8x256xf32>, vector<256x128xf32>, vector<8x128xf32> -> vector<8x128xf32>
    %cst_31 = arith.constant dense<0.000000e+00> : vector<8x128xf32>
    %51 = tpu.matmul %48, %49, %cst_31 {dimension_numbers = #tpu.dot_dimension_numbers<[1], [0], [0], [1], [0, 0, 1, 1], [], []>} : vector<8x256xf32>, vector<256x128xf32>, vector<8x128xf32> -> vector<8x128xf32>
    %52 = vector.shape_cast %51 : vector<8x128xf32> to vector<1x8x128xf32>
    %53 = vector.shape_cast %50 : vector<8x128xf32> to vector<8x1x128xf32>
    %54 = vector.broadcast %52 : vector<1x8x128xf32> to vector<8x8x128xf32>
    %55 = vector.broadcast %53 : vector<8x1x128xf32> to vector<8x8x128xf32>
    %56 = arith.subf %54, %55 : vector<8x8x128xf32>
    %c0_32 = arith.constant 0 : index
    %c0_33 = arith.constant 0 : index
    %57 = vector.load %arg5[%c0_32, %c0_33] : memref<1x128xf32, #tpu.memory_space<vmem>>, vector<1x128xf32>
    %58 = vector.shape_cast %57 : vector<1x128xf32> to vector<1x1x128xf32>
    %59 = vector.broadcast %58 : vector<1x1x128xf32> to vector<8x8x128xf32>
    %60 = arith.addf %56, %59 : vector<8x8x128xf32>
    %cst_34 = arith.constant 0.000000e+00 : f32
    %61 = vector.broadcast %cst_34 : f32 to vector<8x8x128xf32>
    %62 = arith.maximumf %60, %61 : vector<8x8x128xf32>
    %c0_35 = arith.constant 0 : index
    %c0_36 = arith.constant 0 : index
    %63 = vector.load %arg6[%c0_35, %c0_36] : memref<1x128xf32, #tpu.memory_space<vmem>>, vector<1x128xf32>
    %64 = vector.shape_cast %63 : vector<1x128xf32> to vector<1x1x128xf32>
    %65 = vector.broadcast %64 : vector<1x1x128xf32> to vector<8x8x128xf32>
    %66 = arith.mulf %62, %65 : vector<8x8x128xf32>
    %cst_37 = arith.constant dense<0.000000e+00> : vector<8x8xf32>
    %67 = vector.multi_reduction <add>, %66, %cst_37 [2] : vector<8x8x128xf32> to vector<8x8xf32>
    %c0_38 = arith.constant 0 : index
    %c0_39 = arith.constant 0 : index
    %68 = vector.load %arg7[%c0_38, %c0_39] : memref<1x1xf32, #tpu.memory_space<vmem>>, vector<1x1xf32>
    %69 = vector.extract %68[0, 0] : f32 from vector<1x1xf32>
    %70 = vector.broadcast %69 : f32 to vector<8x8xf32>
    %71 = arith.addf %67, %70 : vector<8x8xf32>
    %c0_40 = arith.constant 0 : index
    %c0_41 = arith.constant 0 : index
    %c0_42 = arith.constant 0 : index
    %72 = vector.load %arg8[%c0_40, %c0_41, %c0_42] : memref<1x8x8xf32, #tpu.memory_space<vmem>>, vector<1x8x8xf32>
    %73 = vector.shape_cast %72 : vector<1x8x8xf32> to vector<8x8xf32>
    %74 = vector.shape_cast %71 : vector<8x8xf32> to vector<1x8x8xf32>
    tpu.vector_store %arg8[%c0_40, %c0_41, %c0_42], %74 {strides = array<i32>} : memref<1x8x8xf32, #tpu.memory_space<vmem>>, vector<1x8x8xf32>,
    return
  }
  func.func @transform_0(%arg0: i32) -> (i32, i32, i32) {
    %c0_i32 = arith.constant 0 : i32
    %c0_i32_0 = arith.constant 0 : i32
    %c0_i32_1 = arith.constant 0 : i32
    return %arg0, %c0_i32, %c0_i32_0 : i32, i32, i32
  }
  func.func @transform_1(%arg0: i32) -> (i32, i32, i32) {
    %c0_i32 = arith.constant 0 : i32
    %c0_i32_0 = arith.constant 0 : i32
    %c0_i32_1 = arith.constant 0 : i32
    return %arg0, %c0_i32, %c0_i32_0 : i32, i32, i32
  }
  func.func @transform_2(%arg0: i32) -> (i32, i32, i32) {
    %c0_i32 = arith.constant 0 : i32
    %c0_i32_0 = arith.constant 0 : i32
    %c0_i32_1 = arith.constant 0 : i32
    %c0_i32_2 = arith.constant 0 : i32
    return %c0_i32, %c0_i32_0, %c0_i32_1 : i32, i32, i32
  }
  func.func @transform_3(%arg0: i32) -> (i32, i32) {
    %c0_i32 = arith.constant 0 : i32
    %c0_i32_0 = arith.constant 0 : i32
    %c0_i32_1 = arith.constant 0 : i32
    return %c0_i32, %c0_i32_0 : i32, i32
  }
  func.func @transform_4(%arg0: i32) -> (i32, i32) {
    %c0_i32 = arith.constant 0 : i32
    %c0_i32_0 = arith.constant 0 : i32
    %c0_i32_1 = arith.constant 0 : i32
    return %c0_i32, %c0_i32_0 : i32, i32
  }
  func.func @transform_5(%arg0: i32) -> (i32, i32) {
    %c0_i32 = arith.constant 0 : i32
    %c0_i32_0 = arith.constant 0 : i32
    %c0_i32_1 = arith.constant 0 : i32
    return %c0_i32, %c0_i32_0 : i32, i32
  }
  func.func @transform_6(%arg0: i32) -> (i32, i32) {
    %c0_i32 = arith.constant 0 : i32
    %c0_i32_0 = arith.constant 0 : i32
    %c0_i32_1 = arith.constant 0 : i32
    return %c0_i32, %c0_i32_0 : i32, i32
  }
  func.func @transform_7(%arg0: i32) -> (i32, i32, i32) {
    %c0_i32 = arith.constant 0 : i32
    %c0_i32_0 = arith.constant 0 : i32
    %c0_i32_1 = arith.constant 0 : i32
    return %arg0, %c0_i32, %c0_i32_0 : i32, i32, i32
  }
}

</mosaic_0001>

<llo_original>
// kernel: message_passing_op_forward.1
$region0: #{message_passing_op_forward.1}
  #allocation0 [shape = 'u32[]', space=smem, size = 0x4, offset = 0x4, fixed_abs, tag = 'smem constant byte address 0x4 - core index']
  #allocation1 [shape = 'u32[144,128]{1,0:T(1,128)}', space=vmem, size = 0x12000, scoped, tag = 'internal scratch']
  #allocation2 [shape = 'f32[1,1]{1,0:T(1,128)S(1)}', space=vmem, size = 0x200, scoped, tag = 'scoped memory for message_passing_op_forward.1']
  %s0 = inlined_call_operand.vmem [shape: bf16[4,16,16], index: 0, kind: input, shape index: {}]
  %s1 = inlined_call_operand.vmem [shape: f32[4,16,256], index: 1, kind: input, shape index: {}]
  %s2 = inlined_call_operand.vmem [shape: bf16[4,256,256], index: 2, kind: input, shape index: {}]
  %s3 = inlined_call_operand.vmem [shape: f32[256,128], index: 3, kind: input, shape index: {}]
  %s4 = inlined_call_operand.vmem [shape: f32[1,128], index: 4, kind: input, shape index: {}]
  %s5 = inlined_call_operand.vmem [shape: f32[1,128], index: 5, kind: input, shape index: {}]
  %s6 = inlined_call_operand.<no memory space> [shape: f32[1,1], index: 6, kind: input, shape index: {}]
  %s7 = inlined_call_operand.hbm [shape: f32[4,8,8], index: 7, kind: output, shape index: {}]
  %s8 = sld [smem:[#allocation0]]
  $region61: #{message_passing_op_forward.1} parent=0
    _
  %s10 = ssub.s32 1, %s8
  %s11 = scalar_select 0, %s10, %s8
  %v12 = vstv %s6
  %13 = vst [vmem:[#allocation2] sm:$0x1] %v12
  $region1: #{message_passing_op_forward.1} parent=0
    #allocation3 [shape = 'u8[8192]{0}', space=vmem, size = 0x2000, scoped, tag = 'output window, operand 0']
    #allocation4 [shape = 's32[2]{0}', space=sflag, size = 0x8, scoped, tag = 'scoped memory for message_passing_op_forward.1']
    %14 = vsyncpa [#allocation4], 0
    %s15 = scalar_lea.sflag [#allocation4], 1
    %16 = vsyncpa %s15, 0
    loop: start=0, step=1, limit=6
    $region2: #{message_passing_op_forward.1} parent=1 // loop_pre_header
      _
    $region3: #{message_passing_op_forward.1} parent=1 // loop_header
      %s18 = sphi 0, %s22
      %p19 = scmp.ge.s32.totalorder %s18, 6
      %s28 = sphi 0, %s30
      %s31 = sphi 0, %s28
      %s32 = sphi 0, %s31
      %s48 = sphi 0, %s32
      %s54 = sphi 0, %s56
      %s57 = sphi 0, %s54
      %s58 = sphi 0, %s57
      %s74 = sphi 0, %s58
      %s78 = sphi 0, %s78
      %s80 = sphi 0, %s78
      %s81 = sphi 0, %s80
      %s95 = sphi 0, %s81
      %s99 = sphi 0, %s99
      %s101 = sphi 0, %s99
      %s102 = sphi 0, %s101
      %s116 = sphi 0, %s102
      %s120 = sphi 0, %s120
      %s122 = sphi 0, %s120
      %s123 = sphi 0, %s122
      %s137 = sphi 0, %s123
      %s141 = sphi 0, %s141
      %s143 = sphi 0, %s141
      %s144 = sphi 0, %s143
      %s158 = sphi 0, %s144
      %s162 = sphi 0, %s162
      %s164 = sphi 0, %s162
      %s165 = sphi 0, %s164
      %s179 = sphi 0, %s165
      %s185 = sphi 0, %s187
      %s188 = sphi 0, %s185
      %s189 = sphi 0, %s188
      %s205 = sphi 0, %s189
    $region4: #{message_passing_op_forward.1} parent=1 // loop_header_branch
      %21 = sbr.rel (%p19) target = $region8
    $region5: #{message_passing_op_forward.1} parent=1 // loop_body
      %s23 = ssub.s32 %s18, 1
      %s24 = ssub.s32 %s18, 2
      %s25 = sadd.s32 %s18, 1
      %s26 = ssub.s32 %s18, %s25
      %p27 = scmp.eq.s32.totalorder %s26, 0
      %s29 = sadd.s32 %s28, 1
      %s30 = scalar_select %p27, %s28, %s29
      %p33 = pneg %p27
      %p34 = scmp.eq.s32.totalorder %s18, 3
      %p35 = por %p33, %p34
      %p36 = scmp.ne.s32.totalorder %s28, %s31
      %p37 = scmp.eq.s32.totalorder %s18, 0
      %p38 = por %p36, %p37
      %p39 = scmp.ne.s32.totalorder %s28, %s31
      %p40 = scmp.eq.s32.totalorder %s23, 3
      %p41 = por %p39, %p40
      %p42 = scmp.ne.s32.totalorder %s31, %s32
      %p43 = scmp.eq.s32.totalorder %s23, 0
      %p44 = por %p42, %p43
      %p45 = scmp.ne.s32.totalorder %s31, %s32
      %p46 = scmp.eq.s32.totalorder %s24, 3
      %p47 = por %p45, %p46
      %p49 = scmp.ne.s32.totalorder %s32, %s48
      %p50 = scmp.eq.s32.totalorder %s24, 0
      %p51 = por %p49, %p50
      %s52 = ssub.s32 %s18, %s25
      %p53 = scmp.eq.s32.totalorder %s52, 0
      %s55 = sadd.s32 %s54, 1
      %s56 = scalar_select %p53, %s54, %s55
      %p59 = pneg %p53
      %p60 = scmp.eq.s32.totalorder %s18, 3
      %p61 = por %p59, %p60
      %p62 = scmp.ne.s32.totalorder %s54, %s57
      %p63 = scmp.eq.s32.totalorder %s18, 0
      %p64 = por %p62, %p63
      %p65 = scmp.ne.s32.totalorder %s54, %s57
      %p66 = scmp.eq.s32.totalorder %s23, 3
      %p67 = por %p65, %p66
      %p68 = scmp.ne.s32.totalorder %s57, %s58
      %p69 = scmp.eq.s32.totalorder %s23, 0
      %p70 = por %p68, %p69
      %p71 = scmp.ne.s32.totalorder %s57, %s58
      %p72 = scmp.eq.s32.totalorder %s24, 3
      %p73 = por %p71, %p72
      %p75 = scmp.ne.s32.totalorder %s58, %s74
      %p76 = scmp.eq.s32.totalorder %s24, 0
      %p77 = por %p75, %p76
      %s79 = sadd.s32 %s78, 1
      %p82 = scmp.eq.s32.totalorder %s18, 3
      %p83 = scmp.ne.s32.totalorder %s78, %s80
      %p84 = scmp.eq.s32.totalorder %s18, 0
      %p85 = por %p83, %p84
      %p86 = scmp.ne.s32.totalorder %s78, %s80
      %p87 = scmp.eq.s32.totalorder %s23, 3
      %p88 = por %p86, %p87
      %p89 = scmp.ne.s32.totalorder %s80, %s81
      %p90 = scmp.eq.s32.totalorder %s23, 0
      %p91 = por %p89, %p90
      %p92 = scmp.ne.s32.totalorder %s80, %s81
      %p93 = scmp.eq.s32.totalorder %s24, 3
      %p94 = por %p92, %p93
      %p96 = scmp.ne.s32.totalorder %s81, %s95
      %p97 = scmp.eq.s32.totalorder %s24, 0
      %p98 = por %p96, %p97
      %s100 = sadd.s32 %s99, 1
      %p103 = scmp.eq.s32.totalorder %s18, 3
      %p104 = scmp.ne.s32.totalorder %s99, %s101
      %p105 = scmp.eq.s32.totalorder %s18, 0
      %p106 = por %p104, %p105
      %p107 = scmp.ne.s32.totalorder %s99, %s101
      %p108 = scmp.eq.s32.totalorder %s23, 3
      %p109 = por %p107, %p108
      %p110 = scmp.ne.s32.totalorder %s101, %s102
      %p111 = scmp.eq.s32.totalorder %s23, 0
      %p112 = por %p110, %p111
      %p113 = scmp.ne.s32.totalorder %s101, %s102
      %p114 = scmp.eq.s32.totalorder %s24, 3
      %p115 = por %p113, %p114
      %p117 = scmp.ne.s32.totalorder %s102, %s116
      %p118 = scmp.eq.s32.totalorder %s24, 0
      %p119 = por %p117, %p118
      %s121 = sadd.s32 %s120, 1
      %p124 = scmp.eq.s32.totalorder %s18, 3
      %p125 = scmp.ne.s32.totalorder %s120, %s122
      %p126 = scmp.eq.s32.totalorder %s18, 0
      %p127 = por %p125, %p126
      %p128 = scmp.ne.s32.totalorder %s120, %s122
      %p129 = scmp.eq.s32.totalorder %s23, 3
      %p130 = por %p128, %p129
      %p131 = scmp.ne.s32.totalorder %s122, %s123
      %p132 = scmp.eq.s32.totalorder %s23, 0
      %p133 = por %p131, %p132
      %p134 = scmp.ne.s32.totalorder %s122, %s123
      %p135 = scmp.eq.s32.totalorder %s24, 3
      %p136 = por %p134, %p135
      %p138 = scmp.ne.s32.totalorder %s123, %s137
      %p139 = scmp.eq.s32.totalorder %s24, 0
      %p140 = por %p138, %p139
      %s142 = sadd.s32 %s141, 1
      %p145 = scmp.eq.s32.totalorder %s18, 3
      %p146 = scmp.ne.s32.totalorder %s141, %s143
      %p147 = scmp.eq.s32.totalorder %s18, 0
      %p148 = por %p146, %p147
      %p149 = scmp.ne.s32.totalorder %s141, %s143
      %p150 = scmp.eq.s32.totalorder %s23, 3
      %p151 = por %p149, %p150
      %p152 = scmp.ne.s32.totalorder %s143, %s144
      %p153 = scmp.eq.s32.totalorder %s23, 0
      %p154 = por %p152, %p153
      %p155 = scmp.ne.s32.totalorder %s143, %s144
      %p156 = scmp.eq.s32.totalorder %s24, 3
      %p157 = por %p155, %p156
      %p159 = scmp.ne.s32.totalorder %s144, %s158
      %p160 = scmp.eq.s32.totalorder %s24, 0
      %p161 = por %p159, %p160
      %s163 = sadd.s32 %s162, 1
      %p166 = scmp.eq.s32.totalorder %s18, 3
      %p167 = scmp.ne.s32.totalorder %s162, %s164
      %p168 = scmp.eq.s32.totalorder %s18, 0
      %p169 = por %p167, %p168
      %p170 = scmp.ne.s32.totalorder %s162, %s164
      %p171 = scmp.eq.s32.totalorder %s23, 3
      %p172 = por %p170, %p171
      %p173 = scmp.ne.s32.totalorder %s164, %s165
      %p174 = scmp.eq.s32.totalorder %s23, 0
      %p175 = por %p173, %p174
      %p176 = scmp.ne.s32.totalorder %s164, %s165
      %p177 = scmp.eq.s32.totalorder %s24, 3
      %p178 = por %p176, %p177
      %p180 = scmp.ne.s32.totalorder %s165, %s179
      %p181 = scmp.eq.s32.totalorder %s24, 0
      %p182 = por %p180, %p181
      %s183 = ssub.s32 %s18, %s25
      %p184 = scmp.eq.s32.totalorder %s183, 0
      %s186 = sadd.s32 %s185, 1
      %s187 = scalar_select %p184, %s185, %s186
      %p190 = pneg %p184
      %p191 = scmp.eq.s32.totalorder %s18, 3
      %p192 = por %p190, %p191
      %p193 = scmp.ne.s32.totalorder %s185, %s188
      %p194 = scmp.eq.s32.totalorder %s18, 0
      %p195 = por %p193, %p194
      %p196 = scmp.ne.s32.totalorder %s185, %s188
      %p197 = scmp.eq.s32.totalorder %s23, 3
      %p198 = por %p196, %p197
      %p199 = scmp.ne.s32.totalorder %s188, %s189
      %p200 = scmp.eq.s32.totalorder %s23, 0
      %p201 = por %p199, %p200
      %p202 = scmp.ne.s32.totalorder %s188, %s189
      %p203 = scmp.eq.s32.totalorder %s24, 3
      %p204 = por %p202, %p203
      %p206 = scmp.ne.s32.totalorder %s189, %s205
      %p207 = scmp.eq.s32.totalorder %s24, 0
      %p208 = por %p206, %p207
      %p209 = scmp.le.s32.totalorder 1, %s18
      %p210 = scmp.lt.s32.totalorder %s18, 5
      %p211 = pnand %p209, %p210
      %p212 = pneg %p211
      // Predicated region
      $region9: #{message_passing_op_forward.1} parent=5 // pred_check
        _
      $region10: #{message_passing_op_forward.1} parent=5 // pred_check_branch
        %214 = sbr.rel (%p211) target = $region12
      $region11: #{message_passing_op_forward.1} parent=5 // pred_region
        %s215 = ssub.s32 %s18, 1
        // Predicated region
        $region13: #{message_passing_op_forward.1} parent=11 // pred_check
          %p216 = pneg %p91
        $region14: #{message_passing_op_forward.1} parent=11 // pred_check_branch
          %218 = sbr.rel (%p216) target = $region16
        $region15: #{message_passing_op_forward.1} parent=11 // pred_region
          _
        $region16: #{message_passing_op_forward.1} parent=11 // pred_fallthru
          _
        // Predicated region
        $region17: #{message_passing_op_forward.1} parent=11 // pred_check
          %p219 = pneg %p112
        $region18: #{message_passing_op_forward.1} parent=11 // pred_check_branch
          %221 = sbr.rel (%p219) target = $region20
        $region19: #{message_passing_op_forward.1} parent=11 // pred_region
          _
        $region20: #{message_passing_op_forward.1} parent=11 // pred_fallthru
          _
        // Predicated region
        $region21: #{message_passing_op_forward.1} parent=11 // pred_check
          %p222 = pneg %p133
        $region22: #{message_passing_op_forward.1} parent=11 // pred_check_branch
          %224 = sbr.rel (%p222) target = $region24
        $region23: #{message_passing_op_forward.1} parent=11 // pred_region
          _
        $region24: #{message_passing_op_forward.1} parent=11 // pred_fallthru
          _
        // Predicated region
        $region25: #{message_passing_op_forward.1} parent=11 // pred_check
          %p225 = pneg %p154
        $region26: #{message_passing_op_forward.1} parent=11 // pred_check_branch
          %227 = sbr.rel (%p225) target = $region28
        $region27: #{message_passing_op_forward.1} parent=11 // pred_region
          _
        $region28: #{message_passing_op_forward.1} parent=11 // pred_fallthru
          _
        // Predicated region
        $region29: #{message_passing_op_forward.1} parent=11 // pred_check
          %p228 = pneg %p175
        $region30: #{message_passing_op_forward.1} parent=11 // pred_check_branch
          %230 = sbr.rel (%p228) target = $region32
        $region31: #{message_passing_op_forward.1} parent=11 // pred_region
          _
        $region32: #{message_passing_op_forward.1} parent=11 // pred_fallthru
          _
      $region12: #{message_passing_op_forward.1} parent=5 // pred_fallthru
        _
      %p231 = scmp.lt.s32.totalorder %s18, 4
      // Predicated region
      $region33: #{message_passing_op_forward.1} parent=5 // pred_check
        %p232 = pneg %p231
      $region34: #{message_passing_op_forward.1} parent=5 // pred_check_branch
        %234 = sbr.rel (%p232) target = $region36
      $region35: #{message_passing_op_forward.1} parent=5 // pred_region
        // Predicated region
        $region37: #{message_passing_op_forward.1} parent=35 // pred_check
          %p235 = pneg %p38
        $region38: #{message_passing_op_forward.1} parent=35 // pred_check_branch
          %237 = sbr.rel (%p235) target = $region40
        $region39: #{message_passing_op_forward.1} parent=35 // pred_region
          %p238 = scmp.lt.s32.totalorder %s18, 3
          %s239 = scalar_select %p238, %s18, 3
          %s240 = smul.addr %s239, 2
          %s241 = smul.addr %s240, 4
          %s242 = scalar_lea.vmem %s0, %s241
        $region40: #{message_passing_op_forward.1} parent=35 // pred_fallthru
          _
        // Predicated region
        $region41: #{message_passing_op_forward.1} parent=35 // pred_check
          %p243 = pneg %p64
        $region42: #{message_passing_op_forward.1} parent=35 // pred_check_branch
          %245 = sbr.rel (%p243) target = $region44
        $region43: #{message_passing_op_forward.1} parent=35 // pred_region
          %p246 = scmp.lt.s32.totalorder %s18, 3
          %s247 = scalar_select %p246, %s18, 3
          %s248 = smul.addr %s247, 4
          %s249 = smul.addr %s248, 8
          %s250 = scalar_lea.vmem %s1, %s249
        $region44: #{message_passing_op_forward.1} parent=35 // pred_fallthru
          _
      $region36: #{message_passing_op_forward.1} parent=5 // pred_fallthru
        _
      %p251 = scmp.le.s32.totalorder 1, %s18
      %p252 = scmp.lt.s32.totalorder %s18, 5
      %p253 = pnand %p251, %p252
      %p254 = pneg %p253
      // Predicated region
      $region45: #{message_passing_op_forward.1} parent=5 // pred_check
        _
      $region46: #{message_passing_op_forward.1} parent=5 // pred_check_branch
        %256 = sbr.rel (%p253) target = $region48
      $region47: #{message_passing_op_forward.1} parent=5 // pred_region
        %s257 = ssub.s32 %s18, 1
        %p258 = scmp.lt.s32.totalorder %s23, 3
        %s259 = scalar_select %p258, %s23, 3
        %s260 = smul.addr %s259, 2
        %s261 = smul.addr %s260, 4
        %s262 = scalar_lea.vmem %s0, %s261
        %p263 = pneg %p44
        %p264 = pneg %p41
        %p265 = scmp.lt.s32.totalorder %s23, 3
        %s266 = scalar_select %p265, %s23, 3
        %s267 = smul.addr %s266, 4
        %s268 = smul.addr %s267, 8
        %s269 = scalar_lea.vmem %s1, %s268
        %p270 = pneg %p70
        %p271 = pneg %p67
        %p272 = pneg %p91
        %p273 = pneg %p88
        %p274 = pneg %p112
        %p275 = pneg %p109
        %p276 = pneg %p133
        %p277 = pneg %p130
        %p278 = pneg %p154
        %p279 = pneg %p151
        %p280 = pneg %p175
        %p281 = pneg %p172
        %p282 = pneg %p201
        %p283 = pneg %p198
        %s284 = sand.u32 %s188, 1
        %s285 = scalar_lea.sflag [#allocation4], %s284
        %s286 = sand.u32 %s188, 1
        %s287 = smul.addr %s286, 8
        %s288 = scalar_lea.vmem [#allocation3], %s287
        %p289 = scmp.lt.s32.totalorder %s23, 3
        %s290 = scalar_select %p289, %s23, 3
        %s291 = smul.addr %s290, 2
        %s292 = smul.addr %s291, 4
        %s293 = scalar_lea.vmem %s0, %s292
        %p294 = scmp.lt.s32.totalorder %s23, 3
        %s295 = scalar_select %p294, %s23, 3
        %s296 = smul.addr %s295, 4
        %s297 = smul.addr %s296, 8
        %s298 = scalar_lea.vmem %s1, %s297
        %v300 = vld [vmem:[%s293] sm:$0xf]
        %v301 = vld [vmem:[%s293 + $0x4] sm:$0xf]
        %v302 = vld [vmem:[%s298] sm:$0xff]
        %v303 = vld [vmem:[%s298 + $0x8] sm:$0xff]
        %v304 = vld [vmem:[%s298 + $0x10] sm:$0xff]
        %v305 = vld [vmem:[%s298 + $0x18] sm:$0xff]
        %v306 = vpack.c.bf16 %v304, %v302
        %v307 = vpack.c.bf16 %v305, %v303
        %v308 = vld [vmem:[%s2] sm:$0xff]
        %v309 = vld [vmem:[%s2 + $0x8] sm:$0xff]
        %v310 = vld [vmem:[%s2 + $0x10] sm:$0xff]
        %v311 = vld [vmem:[%s2 + $0x18] sm:$0xff]
        %v312 = vld [vmem:[%s2 + $0x20] sm:$0xff]
        %v313 = vld [vmem:[%s2 + $0x28] sm:$0xff]
        %v314 = vld [vmem:[%s2 + $0x30] sm:$0xff]
        %v315 = vld [vmem:[%s2 + $0x38] sm:$0xff]
        %v316 = vld [vmem:[%s2 + $0x40] sm:$0xff]
        %v317 = vld [vmem:[%s2 + $0x48] sm:$0xff]
        %v318 = vld [vmem:[%s2 + $0x50] sm:$0xff]
        %v319 = vld [vmem:[%s2 + $0x58] sm:$0xff]
        %v320 = vld [vmem:[%s2 + $0x60] sm:$0xff]
        %v321 = vld [vmem:[%s2 + $0x68] sm:$0xff]
        %v322 = vld [vmem:[%s2 + $0x70] sm:$0xff]
        %v323 = vld [vmem:[%s2 + $0x78] sm:$0xff]
        %v324 = vld [vmem:[%s2 + $0x80] sm:$0xff]
        %v325 = vld [vmem:[%s2 + $0x88] sm:$0xff]
        %v326 = vld [vmem:[%s2 + $0x90] sm:$0xff]
        %v327 = vld [vmem:[%s2 + $0x98] sm:$0xff]
        %v328 = vld [vmem:[%s2 + $0xa0] sm:$0xff]
        %v329 = vld [vmem:[%s2 + $0xa8] sm:$0xff]
        %v330 = vld [vmem:[%s2 + $0xb0] sm:$0xff]
        %v331 = vld [vmem:[%s2 + $0xb8] sm:$0xff]
        %v332 = vld [vmem:[%s2 + $0xc0] sm:$0xff]
        %v333 = vld [vmem:[%s2 + $0xc8] sm:$0xff]
        %v334 = vld [vmem:[%s2 + $0xd0] sm:$0xff]
        %v335 = vld [vmem:[%s2 + $0xd8] sm:$0xff]
        %v336 = vld [vmem:[%s2 + $0xe0] sm:$0xff]
        %v337 = vld [vmem:[%s2 + $0xe8] sm:$0xff]
        %v338 = vld [vmem:[%s2 + $0xf0] sm:$0xff]
        %v339 = vld [vmem:[%s2 + $0xf8] sm:$0xff]
        %v372 = vunpack.c.l.b16 %v308
        %v373 = vunpack.c.h.b16 %v308
        %v374 = vunpack.c.l.b16 %v309
        %v375 = vunpack.c.h.b16 %v309
        %v376 = vunpack.c.l.b16 %v310
        %v377 = vunpack.c.h.b16 %v310
        %v378 = vunpack.c.l.b16 %v311
        %v379 = vunpack.c.h.b16 %v311
        %v380 = vunpack.c.l.b16 %v312
        %v381 = vunpack.c.h.b16 %v312
        %v382 = vunpack.c.l.b16 %v313
        %v383 = vunpack.c.h.b16 %v313
        %v384 = vunpack.c.l.b16 %v314
        %v385 = vunpack.c.h.b16 %v314
        %v386 = vunpack.c.l.b16 %v315
        %v387 = vunpack.c.h.b16 %v315
        %v388 = vunpack.c.l.b16 %v316
        %v389 = vunpack.c.h.b16 %v316
        %v390 = vunpack.c.l.b16 %v317
        %v391 = vunpack.c.h.b16 %v317
        %v392 = vunpack.c.l.b16 %v318
        %v393 = vunpack.c.h.b16 %v318
        %v394 = vunpack.c.l.b16 %v319
        %v395 = vunpack.c.h.b16 %v319
        %v396 = vunpack.c.l.b16 %v320
        %v397 = vunpack.c.h.b16 %v320
        %v398 = vunpack.c.l.b16 %v321
        %v399 = vunpack.c.h.b16 %v321
        %v400 = vunpack.c.l.b16 %v322
        %v401 = vunpack.c.h.b16 %v322
        %v402 = vunpack.c.l.b16 %v323
        %v403 = vunpack.c.h.b16 %v323
        %v404 = vunpack.c.l.b16 %v324
        %v405 = vunpack.c.h.b16 %v324
        %v406 = vunpack.c.l.b16 %v325
        %v407 = vunpack.c.h.b16 %v325
        %v408 = vunpack.c.l.b16 %v326
        %v409 = vunpack.c.h.b16 %v326
        %v410 = vunpack.c.l.b16 %v327
        %v411 = vunpack.c.h.b16 %v327
        %v412 = vunpack.c.l.b16 %v328
        %v413 = vunpack.c.h.b16 %v328
        %v414 = vunpack.c.l.b16 %v329
        %v415 = vunpack.c.h.b16 %v329
        %v416 = vunpack.c.l.b16 %v330
        %v417 = vunpack.c.h.b16 %v330
        %v418 = vunpack.c.l.b16 %v331
        %v419 = vunpack.c.h.b16 %v331
        %v420 = vunpack.c.l.b16 %v332
        %v421 = vunpack.c.h.b16 %v332
        %v422 = vunpack.c.l.b16 %v333
        %v423 = vunpack.c.h.b16 %v333
        %v424 = vunpack.c.l.b16 %v334
        %v425 = vunpack.c.h.b16 %v334
        %v426 = vunpack.c.l.b16 %v335
        %v427 = vunpack.c.h.b16 %v335
        %v428 = vunpack.c.l.b16 %v336
        %v429 = vunpack.c.h.b16 %v336
        %v430 = vunpack.c.l.b16 %v337
        %v431 = vunpack.c.h.b16 %v337
        %v432 = vunpack.c.l.b16 %v338
        %v433 = vunpack.c.h.b16 %v338
        %v434 = vunpack.c.l.b16 %v339
        %v435 = vunpack.c.h.b16 %v339
        %v436 = vpack.c.b16 %v374, %v372
        %v437 = vpack.c.b16 %v375, %v373
        %v438 = vpack.c.b16 %v378, %v376
        %v439 = vpack.c.b16 %v379, %v377
        %v440 = vpack.c.b16 %v382, %v380
        %v441 = vpack.c.b16 %v383, %v381
        %v442 = vpack.c.b16 %v386, %v384
        %v443 = vpack.c.b16 %v387, %v385
        %v444 = vpack.c.b16 %v390, %v388
        %v445 = vpack.c.b16 %v391, %v389
        %v446 = vpack.c.b16 %v394, %v392
        %v447 = vpack.c.b16 %v395, %v393
        %v448 = vpack.c.b16 %v398, %v396
        %v449 = vpack.c.b16 %v399, %v397
        %v450 = vpack.c.b16 %v402, %v400
        %v451 = vpack.c.b16 %v403, %v401
        %v452 = vpack.c.b16 %v406, %v404
        %v453 = vpack.c.b16 %v407, %v405
        %v454 = vpack.c.b16 %v410, %v408
        %v455 = vpack.c.b16 %v411, %v409
        %v456 = vpack.c.b16 %v414, %v412
        %v457 = vpack.c.b16 %v415, %v413
        %v458 = vpack.c.b16 %v418, %v416
        %v459 = vpack.c.b16 %v419, %v417
        %v460 = vpack.c.b16 %v422, %v420
        %v461 = vpack.c.b16 %v423, %v421
        %v462 = vpack.c.b16 %v426, %v424
        %v463 = vpack.c.b16 %v427, %v425
        %v464 = vpack.c.b16 %v430, %v428
        %v465 = vpack.c.b16 %v431, %v429
        %v466 = vpack.c.b16 %v434, %v432
        %v467 = vpack.c.b16 %v435, %v433
        %500 = vmatprep.subr.bf16.mxu0 %v437
        %501 = vmatpush1.bf16.msra.mxu0 %v436
        %502 = vmatprep.subr.bf16.mxu0 %v439
        %503 = vmatpush1.bf16.msra.mxu0 %v438
        %504 = vmatprep.subr.bf16.mxu0 %v441
        %505 = vmatpush1.bf16.msra.mxu0 %v440
        %506 = vmatprep.subr.bf16.mxu0 %v443
        %507 = vmatpush1.bf16.msra.mxu0 %v442
        %508 = vmatprep.subr.bf16.mxu0 %v445
        %509 = vmatpush1.bf16.msra.mxu0 %v444
        %510 = vmatprep.subr.bf16.mxu0 %v447
        %511 = vmatpush1.bf16.msra.mxu0 %v446
        %512 = vmatprep.subr.bf16.mxu0 %v449
        %513 = vmatpush1.bf16.msra.mxu0 %v448
        %514 = vmatprep.subr.bf16.mxu0 %v451
        %515 = vmatpush1.bf16.msra.mxu0 %v450
        %516 = vmatprep.subr.bf16.mxu0 %v453
        %517 = vmatpush1.bf16.msra.mxu0 %v452
        %518 = vmatprep.subr.bf16.mxu0 %v455
        %519 = vmatpush1.bf16.msra.mxu0 %v454
        %520 = vmatprep.subr.bf16.mxu0 %v457
        %521 = vmatpush1.bf16.msra.mxu0 %v456
        %522 = vmatprep.subr.bf16.mxu0 %v459
        %523 = vmatpush1.bf16.msra.mxu0 %v458
        %524 = vmatprep.subr.bf16.mxu0 %v461
        %525 = vmatpush1.bf16.msra.mxu0 %v460
        %526 = vmatprep.subr.bf16.mxu0 %v463
        %527 = vmatpush1.bf16.msra.mxu0 %v462
        %528 = vmatprep.subr.bf16.mxu0 %v465
        %529 = vmatpush1.bf16.msra.mxu0 %v464
        %530 = vmatprep.subr.bf16.mxu0 %v467
        %531 = vmatpush1.bf16.msra.mxu0 %v466
        %532 = vmatprep.mubr.bf16.mxu0 %v307
        %533 = vmatmul.mubr.bf16.gmra.mrb[0].mxu0 %v306
        %v534 = vpop.f32.mrb[0].mxu0
        %v535 = vadd.f32 0.0, %v534
        %v536 = vpop.f32.mrb[0].mxu0
        %v537 = vadd.f32 0.0, %v536
        %v538 = vpop.f32.mrb[0].mxu0
        %v539 = vadd.f32 0.0, %v538
        %v540 = vpop.f32.mrb[0].mxu0
        %v541 = vadd.f32 0.0, %v540
        %542 = vdwg.mxu0
        %v543 = vmax.f32 %v535, 0.0
        %v544 = vmax.f32 %v537, 0.0
        %v545 = vmax.f32 %v539, 0.0
        %v546 = vmax.f32 %v541, 0.0
        %v547 = vpack.c.bf16 %v545, %v543
        %v548 = vpack.c.bf16 %v546, %v544
        %v551 = vunpack.c.l.b16 %v300
        %v552 = vunpack.c.l.b16 %v301
        %v553 = vpack.c.b16 %v552, %v551
        %vm554 = vcmask 130048
        %v556 = vsel %vm554, %v553, 0
        %558 = vmatprep.subr.bf16.mxu0 %v548
        %559 = vmatpush1.bf16.msra.mxu0 %v547
        %560 = vmatprep.subr.bf16.mxu0 0
        %561 = vmatpush1.bf16.msra.mxu0 0
        %562 = vmatprep.subr.bf16.mxu0 0
        %563 = vmatpush1.bf16.msra.mxu0 0
        %564 = vmatprep.subr.bf16.mxu0 0
        %565 = vmatpush1.bf16.msra.mxu0 0
        %566 = vmatprep.subr.bf16.mxu0 0
        %567 = vmatpush1.bf16.msra.mxu0 0
        %568 = vmatprep.subr.bf16.mxu0 0
        %569 = vmatpush1.bf16.msra.mxu0 0
        %570 = vmatprep.subr.bf16.mxu0 0
        %571 = vmatpush1.bf16.msra.mxu0 0
        %572 = vmatprep.subr.bf16.mxu0 0
        %573 = vmatpush1.bf16.msra.mxu0 0
        %574 = vmatprep.subr.bf16.mxu0 0
        %575 = vmatpush1.bf16.msra.mxu0 0
        %576 = vmatprep.subr.bf16.mxu0 0
        %577 = vmatpush1.bf16.msra.mxu0 0
        %578 = vmatprep.subr.bf16.mxu0 0
        %579 = vmatpush1.bf16.msra.mxu0 0
        %580 = vmatprep.subr.bf16.mxu0 0
        %581 = vmatpush1.bf16.msra.mxu0 0
        %582 = vmatprep.subr.bf16.mxu0 0
        %583 = vmatpush1.bf16.msra.mxu0 0
        %584 = vmatprep.subr.bf16.mxu0 0
        %585 = vmatpush1.bf16.msra.mxu0 0
        %586 = vmatprep.subr.bf16.mxu0 0
        %587 = vmatpush1.bf16.msra.mxu0 0
        %588 = vmatprep.subr.bf16.mxu0 0
        %589 = vmatpush1.bf16.msra.mxu0 0
        %590 = vmatprep.mubr.bf16.mxu0 0
        %591 = vmatmul.mubr.bf16.gmra.mrb[0].mxu0 %v556
        %v592 = vpop.f32.mrb[0].mxu0
        %v593 = vadd.f32 0.0, %v592
        %v594 = vpop.f32.mrb[0].mxu0
        %v595 = vadd.f32 0.0, %v594
        %v596 = vpop.f32.mrb[0].mxu0
        %v597 = vadd.f32 0.0, %v596
        %v598 = vpop.f32.mrb[0].mxu0
        %v599 = vadd.f32 0.0, %v598
        %600 = vdwg.mxu0
        %v601 = vmax.f32 %v593, 0.0
        %v602 = vmax.f32 %v595, 0.0
        %v603 = vmax.f32 %v597, 0.0
        %v604 = vmax.f32 %v599, 0.0
        %v605 = vpack.c.bf16 %v603, %v601
        %v606 = vpack.c.bf16 %v604, %v602
        %s607 = scalar_lea.vmem %s2, 256
        %v608 = vld [vmem:[%s607] sm:$0xff]
        %v609 = vld [vmem:[%s607 + $0x8] sm:$0xff]
        %v610 = vld [vmem:[%s607 + $0x10] sm:$0xff]
        %v611 = vld [vmem:[%s607 + $0x18] sm:$0xff]
        %v612 = vld [vmem:[%s607 + $0x20] sm:$0xff]
        %v613 = vld [vmem:[%s607 + $0x28] sm:$0xff]
        %v614 = vld [vmem:[%s607 + $0x30] sm:$0xff]
        %v615 = vld [vmem:[%s607 + $0x38] sm:$0xff]
        %v616 = vld [vmem:[%s607 + $0x40] sm:$0xff]
        %v617 = vld [vmem:[%s607 + $0x48] sm:$0xff]
        %v618 = vld [vmem:[%s607 + $0x50] sm:$0xff]
        %v619 = vld [vmem:[%s607 + $0x58] sm:$0xff]
        %v620 = vld [vmem:[%s607 + $0x60] sm:$0xff]
        %v621 = vld [vmem:[%s607 + $0x68] sm:$0xff]
        %v622 = vld [vmem:[%s607 + $0x70] sm:$0xff]
        %v623 = vld [vmem:[%s607 + $0x78] sm:$0xff]
        %v624 = vld [vmem:[%s607 + $0x80] sm:$0xff]
        %v625 = vld [vmem:[%s607 + $0x88] sm:$0xff]
        %v626 = vld [vmem:[%s607 + $0x90] sm:$0xff]
        %v627 = vld [vmem:[%s607 + $0x98] sm:$0xff]
        %v628 = vld [vmem:[%s607 + $0xa0] sm:$0xff]
        %v629 = vld [vmem:[%s607 + $0xa8] sm:$0xff]
        %v630 = vld [vmem:[%s607 + $0xb0] sm:$0xff]
        %v631 = vld [vmem:[%s607 + $0xb8] sm:$0xff]
        %v632 = vld [vmem:[%s607 + $0xc0] sm:$0xff]
        %v633 = vld [vmem:[%s607 + $0xc8] sm:$0xff]
        %v634 = vld [vmem:[%s607 + $0xd0] sm:$0xff]
        %v635 = vld [vmem:[%s607 + $0xd8] sm:$0xff]
        %v636 = vld [vmem:[%s607 + $0xe0] sm:$0xff]
        %v637 = vld [vmem:[%s607 + $0xe8] sm:$0xff]
        %v638 = vld [vmem:[%s607 + $0xf0] sm:$0xff]
        %v639 = vld [vmem:[%s607 + $0xf8] sm:$0xff]
        %v672 = vunpack.c.l.b16 %v608
        %v673 = vunpack.c.h.b16 %v608
        %v674 = vunpack.c.l.b16 %v609
        %v675 = vunpack.c.h.b16 %v609
        %v676 = vunpack.c.l.b16 %v610
        %v677 = vunpack.c.h.b16 %v610
        %v678 = vunpack.c.l.b16 %v611
        %v679 = vunpack.c.h.b16 %v611
        %v680 = vunpack.c.l.b16 %v612
        %v681 = vunpack.c.h.b16 %v612
        %v682 = vunpack.c.l.b16 %v613
        %v683 = vunpack.c.h.b16 %v613
        %v684 = vunpack.c.l.b16 %v614
        %v685 = vunpack.c.h.b16 %v614
        %v686 = vunpack.c.l.b16 %v615
        %v687 = vunpack.c.h.b16 %v615
        %v688 = vunpack.c.l.b16 %v616
        %v689 = vunpack.c.h.b16 %v616
        %v690 = vunpack.c.l.b16 %v617
        %v691 = vunpack.c.h.b16 %v617
        %v692 = vunpack.c.l.b16 %v618
        %v693 = vunpack.c.h.b16 %v618
        %v694 = vunpack.c.l.b16 %v619
        %v695 = vunpack.c.h.b16 %v619
        %v696 = vunpack.c.l.b16 %v620
        %v697 = vunpack.c.h.b16 %v620
        %v698 = vunpack.c.l.b16 %v621
        %v699 = vunpack.c.h.b16 %v621
        %v700 = vunpack.c.l.b16 %v622
        %v701 = vunpack.c.h.b16 %v622
        %v702 = vunpack.c.l.b16 %v623
        %v703 = vunpack.c.h.b16 %v623
        %v704 = vunpack.c.l.b16 %v624
        %v705 = vunpack.c.h.b16 %v624
        %v706 = vunpack.c.l.b16 %v625
        %v707 = vunpack.c.h.b16 %v625
        %v708 = vunpack.c.l.b16 %v626
        %v709 = vunpack.c.h.b16 %v626
        %v710 = vunpack.c.l.b16 %v627
        %v711 = vunpack.c.h.b16 %v627
        %v712 = vunpack.c.l.b16 %v628
        %v713 = vunpack.c.h.b16 %v628
        %v714 = vunpack.c.l.b16 %v629
        %v715 = vunpack.c.h.b16 %v629
        %v716 = vunpack.c.l.b16 %v630
        %v717 = vunpack.c.h.b16 %v630
        %v718 = vunpack.c.l.b16 %v631
        %v719 = vunpack.c.h.b16 %v631
        %v720 = vunpack.c.l.b16 %v632
        %v721 = vunpack.c.h.b16 %v632
        %v722 = vunpack.c.l.b16 %v633
        %v723 = vunpack.c.h.b16 %v633
        %v724 = vunpack.c.l.b16 %v634
        %v725 = vunpack.c.h.b16 %v634
        %v726 = vunpack.c.l.b16 %v635
        %v727 = vunpack.c.h.b16 %v635
        %v728 = vunpack.c.l.b16 %v636
        %v729 = vunpack.c.h.b16 %v636
        %v730 = vunpack.c.l.b16 %v637
        %v731 = vunpack.c.h.b16 %v637
        %v732 = vunpack.c.l.b16 %v638
        %v733 = vunpack.c.h.b16 %v638
        %v734 = vunpack.c.l.b16 %v639
        %v735 = vunpack.c.h.b16 %v639
        %v736 = vpack.c.b16 %v674, %v672
        %v737 = vpack.c.b16 %v675, %v673
        %v738 = vpack.c.b16 %v678, %v676
        %v739 = vpack.c.b16 %v679, %v677
        %v740 = vpack.c.b16 %v682, %v680
        %v741 = vpack.c.b16 %v683, %v681
        %v742 = vpack.c.b16 %v686, %v684
        %v743 = vpack.c.b16 %v687, %v685
        %v744 = vpack.c.b16 %v690, %v688
        %v745 = vpack.c.b16 %v691, %v689
        %v746 = vpack.c.b16 %v694, %v692
        %v747 = vpack.c.b16 %v695, %v693
        %v748 = vpack.c.b16 %v698, %v696
        %v749 = vpack.c.b16 %v699, %v697
        %v750 = vpack.c.b16 %v702, %v700
        %v751 = vpack.c.b16 %v703, %v701
        %v752 = vpack.c.b16 %v706, %v704
        %v753 = vpack.c.b16 %v707, %v705
        %v754 = vpack.c.b16 %v710, %v708
        %v755 = vpack.c.b16 %v711, %v709
        %v756 = vpack.c.b16 %v714, %v712
        %v757 = vpack.c.b16 %v715, %v713
        %v758 = vpack.c.b16 %v718, %v716
        %v759 = vpack.c.b16 %v719, %v717
        %v760 = vpack.c.b16 %v722, %v720
        %v761 = vpack.c.b16 %v723, %v721
        %v762 = vpack.c.b16 %v726, %v724
        %v763 = vpack.c.b16 %v727, %v725
        %v764 = vpack.c.b16 %v730, %v728
        %v765 = vpack.c.b16 %v731, %v729
        %v766 = vpack.c.b16 %v734, %v732
        %v767 = vpack.c.b16 %v735, %v733
        %800 = vmatprep.subr.bf16.mxu0 %v737
        %801 = vmatpush1.bf16.msra.mxu0 %v736
        %802 = vmatprep.subr.bf16.mxu0 %v739
        %803 = vmatpush1.bf16.msra.mxu0 %v738
        %804 = vmatprep.subr.bf16.mxu0 %v741
        %805 = vmatpush1.bf16.msra.mxu0 %v740
        %806 = vmatprep.subr.bf16.mxu0 %v743
        %807 = vmatpush1.bf16.msra.mxu0 %v742
        %808 = vmatprep.subr.bf16.mxu0 %v745
        %809 = vmatpush1.bf16.msra.mxu0 %v744
        %810 = vmatprep.subr.bf16.mxu0 %v747
        %811 = vmatpush1.bf16.msra.mxu0 %v746
        %812 = vmatprep.subr.bf16.mxu0 %v749
        %813 = vmatpush1.bf16.msra.mxu0 %v748
        %814 = vmatprep.subr.bf16.mxu0 %v751
        %815 = vmatpush1.bf16.msra.mxu0 %v750
        %816 = vmatprep.subr.bf16.mxu0 %v753
        %817 = vmatpush1.bf16.msra.mxu0 %v752
        %818 = vmatprep.subr.bf16.mxu0 %v755
        %819 = vmatpush1.bf16.msra.mxu0 %v754
        %820 = vmatprep.subr.bf16.mxu0 %v757
        %821 = vmatpush1.bf16.msra.mxu0 %v756
        %822 = vmatprep.subr.bf16.mxu0 %v759
        %823 = vmatpush1.bf16.msra.mxu0 %v758
        %824 = vmatprep.subr.bf16.mxu0 %v761
        %825 = vmatpush1.bf16.msra.mxu0 %v760
        %826 = vmatprep.subr.bf16.mxu0 %v763
        %827 = vmatpush1.bf16.msra.mxu0 %v762
        %828 = vmatprep.subr.bf16.mxu0 %v765
        %829 = vmatpush1.bf16.msra.mxu0 %v764
        %830 = vmatprep.subr.bf16.mxu0 %v767
        %831 = vmatpush1.bf16.msra.mxu0 %v766
        %832 = vmatprep.mubr.bf16.mxu0 %v606
        %833 = vmatmul.mubr.bf16.gmra.mrb[0].mxu0 %v605
        %v834 = vpop.f32.mrb[0].mxu0
        %v835 = vadd.f32 0.0, %v834
        %v836 = vpop.f32.mrb[0].mxu0
        %v837 = vadd.f32 0.0, %v836
        %v838 = vpop.f32.mrb[0].mxu0
        %v839 = vadd.f32 0.0, %v838
        %v840 = vpop.f32.mrb[0].mxu0
        %v841 = vadd.f32 0.0, %v840
        %842 = vdwg.mxu0
        %v843 = vmax.f32 %v835, 0.0
        %v844 = vmax.f32 %v837, 0.0
        %v845 = vmax.f32 %v839, 0.0
        %v846 = vmax.f32 %v841, 0.0
        %v847 = vpack.c.bf16 %v845, %v843
        %v848 = vpack.c.bf16 %v846, %v844
        %849 = vmatprep.subr.bf16.mxu0 %v848
        %850 = vmatpush1.bf16.msra.mxu0 %v847
        %851 = vmatprep.subr.bf16.mxu0 0
        %852 = vmatpush1.bf16.msra.mxu0 0
        %853 = vmatprep.subr.bf16.mxu0 0
        %854 = vmatpush1.bf16.msra.mxu0 0
        %855 = vmatprep.subr.bf16.mxu0 0
        %856 = vmatpush1.bf16.msra.mxu0 0
        %857 = vmatprep.subr.bf16.mxu0 0
        %858 = vmatpush1.bf16.msra.mxu0 0
        %859 = vmatprep.subr.bf16.mxu0 0
        %860 = vmatpush1.bf16.msra.mxu0 0
        %861 = vmatprep.subr.bf16.mxu0 0
        %862 = vmatpush1.bf16.msra.mxu0 0
        %863 = vmatprep.subr.bf16.mxu0 0
        %864 = vmatpush1.bf16.msra.mxu0 0
        %865 = vmatprep.subr.bf16.mxu0 0
        %866 = vmatpush1.bf16.msra.mxu0 0
        %867 = vmatprep.subr.bf16.mxu0 0
        %868 = vmatpush1.bf16.msra.mxu0 0
        %869 = vmatprep.subr.bf16.mxu0 0
        %870 = vmatpush1.bf16.msra.mxu0 0
        %871 = vmatprep.subr.bf16.mxu0 0
        %872 = vmatpush1.bf16.msra.mxu0 0
        %873 = vmatprep.subr.bf16.mxu0 0
        %874 = vmatpush1.bf16.msra.mxu0 0
        %875 = vmatprep.subr.bf16.mxu0 0
        %876 = vmatpush1.bf16.msra.mxu0 0
        %877 = vmatprep.subr.bf16.mxu0 0
        %878 = vmatpush1.bf16.msra.mxu0 0
        %879 = vmatprep.subr.bf16.mxu0 0
        %880 = vmatpush1.bf16.msra.mxu0 0
        %881 = vmatprep.mubr.bf16.mxu0 0
        %882 = vmatmul.mubr.bf16.gmra.mrb[0].mxu0 %v556
        %v883 = vpop.f32.mrb[0].mxu0
        %v884 = vadd.f32 0.0, %v883
        %v885 = vpop.f32.mrb[0].mxu0
        %v886 = vadd.f32 0.0, %v885
        %v887 = vpop.f32.mrb[0].mxu0
        %v888 = vadd.f32 0.0, %v887
        %v889 = vpop.f32.mrb[0].mxu0
        %v890 = vadd.f32 0.0, %v889
        %891 = vdwg.mxu0
        %v892 = vmax.f32 %v884, 0.0
        %v893 = vmax.f32 %v886, 0.0
        %v894 = vmax.f32 %v888, 0.0
        %v895 = vmax.f32 %v890, 0.0
        %v896 = vpack.c.bf16 %v894, %v892
        %v897 = vpack.c.bf16 %v895, %v893
        %s898 = scalar_lea.vmem %s2, 512
        %v899 = vld [vmem:[%s898] sm:$0xff]
        %v900 = vld [vmem:[%s898 + $0x8] sm:$0xff]
        %v901 = vld [vmem:[%s898 + $0x10] sm:$0xff]
        %v902 = vld [vmem:[%s898 + $0x18] sm:$0xff]
        %v903 = vld [vmem:[%s898 + $0x20] sm:$0xff]
        %v904 = vld [vmem:[%s898 + $0x28] sm:$0xff]
        %v905 = vld [vmem:[%s898 + $0x30] sm:$0xff]
        %v906 = vld [vmem:[%s898 + $0x38] sm:$0xff]
        %v907 = vld [vmem:[%s898 + $0x40] sm:$0xff]
        %v908 = vld [vmem:[%s898 + $0x48] sm:$0xff]
        %v909 = vld [vmem:[%s898 + $0x50] sm:$0xff]
        %v910 = vld [vmem:[%s898 + $0x58] sm:$0xff]
        %v911 = vld [vmem:[%s898 + $0x60] sm:$0xff]
        %v912 = vld [vmem:[%s898 + $0x68] sm:$0xff]
        %v913 = vld [vmem:[%s898 + $0x70] sm:$0xff]
        %v914 = vld [vmem:[%s898 + $0x78] sm:$0xff]
        %v915 = vld [vmem:[%s898 + $0x80] sm:$0xff]
        %v916 = vld [vmem:[%s898 + $0x88] sm:$0xff]
        %v917 = vld [vmem:[%s898 + $0x90] sm:$0xff]
        %v918 = vld [vmem:[%s898 + $0x98] sm:$0xff]
        %v919 = vld [vmem:[%s898 + $0xa0] sm:$0xff]
        %v920 = vld [vmem:[%s898 + $0xa8] sm:$0xff]
        %v921 = vld [vmem:[%s898 + $0xb0] sm:$0xff]
        %v922 = vld [vmem:[%s898 + $0xb8] sm:$0xff]
        %v923 = vld [vmem:[%s898 + $0xc0] sm:$0xff]
        %v924 = vld [vmem:[%s898 + $0xc8] sm:$0xff]
        %v925 = vld [vmem:[%s898 + $0xd0] sm:$0xff]
        %v926 = vld [vmem:[%s898 + $0xd8] sm:$0xff]
        %v927 = vld [vmem:[%s898 + $0xe0] sm:$0xff]
        %v928 = vld [vmem:[%s898 + $0xe8] sm:$0xff]
        %v929 = vld [vmem:[%s898 + $0xf0] sm:$0xff]
        %v930 = vld [vmem:[%s898 + $0xf8] sm:$0xff]
        %v963 = vunpack.c.l.b16 %v899
        %v964 = vunpack.c.h.b16 %v899
        %v965 = vunpack.c.l.b16 %v900
        %v966 = vunpack.c.h.b16 %v900
        %v967 = vunpack.c.l.b16 %v901
        %v968 = vunpack.c.h.b16 %v901
        %v969 = vunpack.c.l.b16 %v902
        %v970 = vunpack.c.h.b16 %v902
        %v971 = vunpack.c.l.b16 %v903
        %v972 = vunpack.c.h.b16 %v903
        %v973 = vunpack.c.l.b16 %v904
        %v974 = vunpack.c.h.b16 %v904
        %v975 = vunpack.c.l.b16 %v905
        %v976 = vunpack.c.h.b16 %v905
        %v977 = vunpack.c.l.b16 %v906
        %v978 = vunpack.c.h.b16 %v906
        %v979 = vunpack.c.l.b16 %v907
        %v980 = vunpack.c.h.b16 %v907
        %v981 = vunpack.c.l.b16 %v908
        %v982 = vunpack.c.h.b16 %v908
        %v983 = vunpack.c.l.b16 %v909
        %v984 = vunpack.c.h.b16 %v909
        %v985 = vunpack.c.l.b16 %v910
        %v986 = vunpack.c.h.b16 %v910
        %v987 = vunpack.c.l.b16 %v911
        %v988 = vunpack.c.h.b16 %v911
        %v989 = vunpack.c.l.b16 %v912
        %v990 = vunpack.c.h.b16 %v912
        %v991 = vunpack.c.l.b16 %v913
        %v992 = vunpack.c.h.b16 %v913
        %v993 = vunpack.c.l.b16 %v914
        %v994 = vunpack.c.h.b16 %v914
        %v995 = vunpack.c.l.b16 %v915
        %v996 = vunpack.c.h.b16 %v915
        %v997 = vunpack.c.l.b16 %v916
        %v998 = vunpack.c.h.b16 %v916
        %v999 = vunpack.c.l.b16 %v917
        %v1000 = vunpack.c.h.b16 %v917
        %v1001 = vunpack.c.l.b16 %v918
        %v1002 = vunpack.c.h.b16 %v918
        %v1003 = vunpack.c.l.b16 %v919
        %v1004 = vunpack.c.h.b16 %v919
        %v1005 = vunpack.c.l.b16 %v920
        %v1006 = vunpack.c.h.b16 %v920
        %v1007 = vunpack.c.l.b16 %v921
        %v1008 = vunpack.c.h.b16 %v921
        %v1009 = vunpack.c.l.b16 %v922
        %v1010 = vunpack.c.h.b16 %v922
        %v1011 = vunpack.c.l.b16 %v923
        %v1012 = vunpack.c.h.b16 %v923
        %v1013 = vunpack.c.l.b16 %v924
        %v1014 = vunpack.c.h.b16 %v924
        %v1015 = vunpack.c.l.b16 %v925
        %v1016 = vunpack.c.h.b16 %v925
        %v1017 = vunpack.c.l.b16 %v926
        %v1018 = vunpack.c.h.b16 %v926
        %v1019 = vunpack.c.l.b16 %v927
        %v1020 = vunpack.c.h.b16 %v927
        %v1021 = vunpack.c.l.b16 %v928
        %v1022 = vunpack.c.h.b16 %v928
        %v1023 = vunpack.c.l.b16 %v929
        %v1024 = vunpack.c.h.b16 %v929
        %v1025 = vunpack.c.l.b16 %v930
        %v1026 = vunpack.c.h.b16 %v930
        %v1027 = vpack.c.b16 %v965, %v963
        %v1028 = vpack.c.b16 %v966, %v964
        %v1029 = vpack.c.b16 %v969, %v967
        %v1030 = vpack.c.b16 %v970, %v968
        %v1031 = vpack.c.b16 %v973, %v971
        %v1032 = vpack.c.b16 %v974, %v972
        %v1033 = vpack.c.b16 %v977, %v975
        %v1034 = vpack.c.b16 %v978, %v976
        %v1035 = vpack.c.b16 %v981, %v979
        %v1036 = vpack.c.b16 %v982, %v980
        %v1037 = vpack.c.b16 %v985, %v983
        %v1038 = vpack.c.b16 %v986, %v984
        %v1039 = vpack.c.b16 %v989, %v987
        %v1040 = vpack.c.b16 %v990, %v988
        %v1041 = vpack.c.b16 %v993, %v991
        %v1042 = vpack.c.b16 %v994, %v992
        %v1043 = vpack.c.b16 %v997, %v995
        %v1044 = vpack.c.b16 %v998, %v996
        %v1045 = vpack.c.b16 %v1001, %v999
        %v1046 = vpack.c.b16 %v1002, %v1000
        %v1047 = vpack.c.b16 %v1005, %v1003
        %v1048 = vpack.c.b16 %v1006, %v1004
        %v1049 = vpack.c.b16 %v1009, %v1007
        %v1050 = vpack.c.b16 %v1010, %v1008
        %v1051 = vpack.c.b16 %v1013, %v1011
        %v1052 = vpack.c.b16 %v1014, %v1012
        %v1053 = vpack.c.b16 %v1017, %v1015
        %v1054 = vpack.c.b16 %v1018, %v1016
        %v1055 = vpack.c.b16 %v1021, %v1019
        %v1056 = vpack.c.b16 %v1022, %v1020
        %v1057 = vpack.c.b16 %v1025, %v1023
        %v1058 = vpack.c.b16 %v1026, %v1024
        %1091 = vmatprep.subr.bf16.mxu0 %v1028
        %1092 = vmatpush1.bf16.msra.mxu0 %v1027
        %1093 = vmatprep.subr.bf16.mxu0 %v1030
        %1094 = vmatpush1.bf16.msra.mxu0 %v1029
        %1095 = vmatprep.subr.bf16.mxu0 %v1032
        %1096 = vmatpush1.bf16.msra.mxu0 %v1031
        %1097 = vmatprep.subr.bf16.mxu0 %v1034
        %1098 = vmatpush1.bf16.msra.mxu0 %v1033
        %1099 = vmatprep.subr.bf16.mxu0 %v1036
        %1100 = vmatpush1.bf16.msra.mxu0 %v1035
        %1101 = vmatprep.subr.bf16.mxu0 %v1038
        %1102 = vmatpush1.bf16.msra.mxu0 %v1037
        %1103 = vmatprep.subr.bf16.mxu0 %v1040
        %1104 = vmatpush1.bf16.msra.mxu0 %v1039
        %1105 = vmatprep.subr.bf16.mxu0 %v1042
        %1106 = vmatpush1.bf16.msra.mxu0 %v1041
        %1107 = vmatprep.subr.bf16.mxu0 %v1044
        %1108 = vmatpush1.bf16.msra.mxu0 %v1043
        %1109 = vmatprep.subr.bf16.mxu0 %v1046
        %1110 = vmatpush1.bf16.msra.mxu0 %v1045
        %1111 = vmatprep.subr.bf16.mxu0 %v1048
        %1112 = vmatpush1.bf16.msra.mxu0 %v1047
        %1113 = vmatprep.subr.bf16.mxu0 %v1050
        %1114 = vmatpush1.bf16.msra.mxu0 %v1049
        %1115 = vmatprep.subr.bf16.mxu0 %v1052
        %1116 = vmatpush1.bf16.msra.mxu0 %v1051
        %1117 = vmatprep.subr.bf16.mxu0 %v1054
        %1118 = vmatpush1.bf16.msra.mxu0 %v1053
        %1119 = vmatprep.subr.bf16.mxu0 %v1056
        %1120 = vmatpush1.bf16.msra.mxu0 %v1055
        %1121 = vmatprep.subr.bf16.mxu0 %v1058
        %1122 = vmatpush1.bf16.msra.mxu0 %v1057
        %1123 = vmatprep.mubr.bf16.mxu0 %v897
        %1124 = vmatmul.mubr.bf16.gmra.mrb[0].mxu0 %v896
        %v1125 = vpop.f32.mrb[0].mxu0
        %v1126 = vadd.f32 0.0, %v1125
        %v1127 = vpop.f32.mrb[0].mxu0
        %v1128 = vadd.f32 0.0, %v1127
        %v1129 = vpop.f32.mrb[0].mxu0
        %v1130 = vadd.f32 0.0, %v1129
        %v1131 = vpop.f32.mrb[0].mxu0
        %v1132 = vadd.f32 0.0, %v1131
        %1133 = vdwg.mxu0
        %v1134 = vmax.f32 %v1126, 0.0
        %v1135 = vmax.f32 %v1128, 0.0
        %v1136 = vmax.f32 %v1130, 0.0
        %v1137 = vmax.f32 %v1132, 0.0
        %v1138 = vpack.c.bf16 %v1136, %v1134
        %v1139 = vpack.c.bf16 %v1137, %v1135
        %1140 = vmatprep.subr.bf16.mxu0 %v1139
        %1141 = vmatpush1.bf16.msra.mxu0 %v1138
        %1142 = vmatprep.subr.bf16.mxu0 0
        %1143 = vmatpush1.bf16.msra.mxu0 0
        %1144 = vmatprep.subr.bf16.mxu0 0
        %1145 = vmatpush1.bf16.msra.mxu0 0
        %1146 = vmatprep.subr.bf16.mxu0 0
        %1147 = vmatpush1.bf16.msra.mxu0 0
        %1148 = vmatprep.subr.bf16.mxu0 0
        %1149 = vmatpush1.bf16.msra.mxu0 0
        %1150 = vmatprep.subr.bf16.mxu0 0
        %1151 = vmatpush1.bf16.msra.mxu0 0
        %1152 = vmatprep.subr.bf16.mxu0 0
        %1153 = vmatpush1.bf16.msra.mxu0 0
        %1154 = vmatprep.subr.bf16.mxu0 0
        %1155 = vmatpush1.bf16.msra.mxu0 0
        %1156 = vmatprep.subr.bf16.mxu0 0
        %1157 = vmatpush1.bf16.msra.mxu0 0
        %1158 = vmatprep.subr.bf16.mxu0 0
        %1159 = vmatpush1.bf16.msra.mxu0 0
        %1160 = vmatprep.subr.bf16.mxu0 0
        %1161 = vmatpush1.bf16.msra.mxu0 0
        %1162 = vmatprep.subr.bf16.mxu0 0
        %1163 = vmatpush1.bf16.msra.mxu0 0
        %1164 = vmatprep.subr.bf16.mxu0 0
        %1165 = vmatpush1.bf16.msra.mxu0 0
        %1166 = vmatprep.subr.bf16.mxu0 0
        %1167 = vmatpush1.bf16.msra.mxu0 0
        %1168 = vmatprep.subr.bf16.mxu0 0
        %1169 = vmatpush1.bf16.msra.mxu0 0
        %1170 = vmatprep.subr.bf16.mxu0 0
        %1171 = vmatpush1.bf16.msra.mxu0 0
        %1172 = vmatprep.mubr.bf16.mxu0 0
        %1173 = vmatmul.mubr.bf16.gmra.mrb[0].mxu0 %v556
        %v1174 = vpop.f32.mrb[0].mxu0
        %v1175 = vadd.f32 0.0, %v1174
        %v1176 = vpop.f32.mrb[0].mxu0
        %v1177 = vadd.f32 0.0, %v1176
        %v1178 = vpop.f32.mrb[0].mxu0
        %v1179 = vadd.f32 0.0, %v1178
        %v1180 = vpop.f32.mrb[0].mxu0
        %v1181 = vadd.f32 0.0, %v1180
        %1182 = vdwg.mxu0
        %v1183 = vmax.f32 %v1175, 0.0
        %v1184 = vmax.f32 %v1177, 0.0
        %v1185 = vmax.f32 %v1179, 0.0
        %v1186 = vmax.f32 %v1181, 0.0
        %v1187 = vpack.c.bf16 %v1185, %v1183
        %v1188 = vpack.c.bf16 %v1186, %v1184
        %s1189 = scalar_lea.vmem %s2, 768
        %v1190 = vld [vmem:[%s1189] sm:$0xff]
        %v1191 = vld [vmem:[%s1189 + $0x8] sm:$0xff]
        %v1192 = vld [vmem:[%s1189 + $0x10] sm:$0xff]
        %v1193 = vld [vmem:[%s1189 + $0x18] sm:$0xff]
        %v1194 = vld [vmem:[%s1189 + $0x20] sm:$0xff]
        %v1195 = vld [vmem:[%s1189 + $0x28] sm:$0xff]
        %v1196 = vld [vmem:[%s1189 + $0x30] sm:$0xff]
        %v1197 = vld [vmem:[%s1189 + $0x38] sm:$0xff]
        %v1198 = vld [vmem:[%s1189 + $0x40] sm:$0xff]
        %v1199 = vld [vmem:[%s1189 + $0x48] sm:$0xff]
        %v1200 = vld [vmem:[%s1189 + $0x50] sm:$0xff]
        %v1201 = vld [vmem:[%s1189 + $0x58] sm:$0xff]
        %v1202 = vld [vmem:[%s1189 + $0x60] sm:$0xff]
        %v1203 = vld [vmem:[%s1189 + $0x68] sm:$0xff]
        %v1204 = vld [vmem:[%s1189 + $0x70] sm:$0xff]
        %v1205 = vld [vmem:[%s1189 + $0x78] sm:$0xff]
        %v1206 = vld [vmem:[%s1189 + $0x80] sm:$0xff]
        %v1207 = vld [vmem:[%s1189 + $0x88] sm:$0xff]
        %v1208 = vld [vmem:[%s1189 + $0x90] sm:$0xff]
        %v1209 = vld [vmem:[%s1189 + $0x98] sm:$0xff]
        %v1210 = vld [vmem:[%s1189 + $0xa0] sm:$0xff]
        %v1211 = vld [vmem:[%s1189 + $0xa8] sm:$0xff]
        %v1212 = vld [vmem:[%s1189 + $0xb0] sm:$0xff]
        %v1213 = vld [vmem:[%s1189 + $0xb8] sm:$0xff]
        %v1214 = vld [vmem:[%s1189 + $0xc0] sm:$0xff]
        %v1215 = vld [vmem:[%s1189 + $0xc8] sm:$0xff]
        %v1216 = vld [vmem:[%s1189 + $0xd0] sm:$0xff]
        %v1217 = vld [vmem:[%s1189 + $0xd8] sm:$0xff]
        %v1218 = vld [vmem:[%s1189 + $0xe0] sm:$0xff]
        %v1219 = vld [vmem:[%s1189 + $0xe8] sm:$0xff]
        %v1220 = vld [vmem:[%s1189 + $0xf0] sm:$0xff]
        %v1221 = vld [vmem:[%s1189 + $0xf8] sm:$0xff]
        %v1254 = vunpack.c.l.b16 %v1190
        %v1255 = vunpack.c.h.b16 %v1190
        %v1256 = vunpack.c.l.b16 %v1191
        %v1257 = vunpack.c.h.b16 %v1191
        %v1258 = vunpack.c.l.b16 %v1192
        %v1259 = vunpack.c.h.b16 %v1192
        %v1260 = vunpack.c.l.b16 %v1193
        %v1261 = vunpack.c.h.b16 %v1193
        %v1262 = vunpack.c.l.b16 %v1194
        %v1263 = vunpack.c.h.b16 %v1194
        %v1264 = vunpack.c.l.b16 %v1195
        %v1265 = vunpack.c.h.b16 %v1195
        %v1266 = vunpack.c.l.b16 %v1196
        %v1267 = vunpack.c.h.b16 %v1196
        %v1268 = vunpack.c.l.b16 %v1197
        %v1269 = vunpack.c.h.b16 %v1197
        %v1270 = vunpack.c.l.b16 %v1198
        %v1271 = vunpack.c.h.b16 %v1198
        %v1272 = vunpack.c.l.b16 %v1199
        %v1273 = vunpack.c.h.b16 %v1199
        %v1274 = vunpack.c.l.b16 %v1200
        %v1275 = vunpack.c.h.b16 %v1200
        %v1276 = vunpack.c.l.b16 %v1201
        %v1277 = vunpack.c.h.b16 %v1201
        %v1278 = vunpack.c.l.b16 %v1202
        %v1279 = vunpack.c.h.b16 %v1202
        %v1280 = vunpack.c.l.b16 %v1203
        %v1281 = vunpack.c.h.b16 %v1203
        %v1282 = vunpack.c.l.b16 %v1204
        %v1283 = vunpack.c.h.b16 %v1204
        %v1284 = vunpack.c.l.b16 %v1205
        %v1285 = vunpack.c.h.b16 %v1205
        %v1286 = vunpack.c.l.b16 %v1206
        %v1287 = vunpack.c.h.b16 %v1206
        %v1288 = vunpack.c.l.b16 %v1207
        %v1289 = vunpack.c.h.b16 %v1207
        %v1290 = vunpack.c.l.b16 %v1208
        %v1291 = vunpack.c.h.b16 %v1208
        %v1292 = vunpack.c.l.b16 %v1209
        %v1293 = vunpack.c.h.b16 %v1209
        %v1294 = vunpack.c.l.b16 %v1210
        %v1295 = vunpack.c.h.b16 %v1210
        %v1296 = vunpack.c.l.b16 %v1211
        %v1297 = vunpack.c.h.b16 %v1211
        %v1298 = vunpack.c.l.b16 %v1212
        %v1299 = vunpack.c.h.b16 %v1212
        %v1300 = vunpack.c.l.b16 %v1213
        %v1301 = vunpack.c.h.b16 %v1213
        %v1302 = vunpack.c.l.b16 %v1214
        %v1303 = vunpack.c.h.b16 %v1214
        %v1304 = vunpack.c.l.b16 %v1215
        %v1305 = vunpack.c.h.b16 %v1215
        %v1306 = vunpack.c.l.b16 %v1216
        %v1307 = vunpack.c.h.b16 %v1216
        %v1308 = vunpack.c.l.b16 %v1217
        %v1309 = vunpack.c.h.b16 %v1217
        %v1310 = vunpack.c.l.b16 %v1218
        %v1311 = vunpack.c.h.b16 %v1218
        %v1312 = vunpack.c.l.b16 %v1219
        %v1313 = vunpack.c.h.b16 %v1219
        %v1314 = vunpack.c.l.b16 %v1220
        %v1315 = vunpack.c.h.b16 %v1220
        %v1316 = vunpack.c.l.b16 %v1221
        %v1317 = vunpack.c.h.b16 %v1221
        %v1318 = vpack.c.b16 %v1256, %v1254
        %v1319 = vpack.c.b16 %v1257, %v1255
        %v1320 = vpack.c.b16 %v1260, %v1258
        %v1321 = vpack.c.b16 %v1261, %v1259
        %v1322 = vpack.c.b16 %v1264, %v1262
        %v1323 = vpack.c.b16 %v1265, %v1263
        %v1324 = vpack.c.b16 %v1268, %v1266
        %v1325 = vpack.c.b16 %v1269, %v1267
        %v1326 = vpack.c.b16 %v1272, %v1270
        %v1327 = vpack.c.b16 %v1273, %v1271
        %v1328 = vpack.c.b16 %v1276, %v1274
        %v1329 = vpack.c.b16 %v1277, %v1275
        %v1330 = vpack.c.b16 %v1280, %v1278
        %v1331 = vpack.c.b16 %v1281, %v1279
        %v1332 = vpack.c.b16 %v1284, %v1282
        %v1333 = vpack.c.b16 %v1285, %v1283
        %v1334 = vpack.c.b16 %v1288, %v1286
        %v1335 = vpack.c.b16 %v1289, %v1287
        %v1336 = vpack.c.b16 %v1292, %v1290
        %v1337 = vpack.c.b16 %v1293, %v1291
        %v1338 = vpack.c.b16 %v1296, %v1294
        %v1339 = vpack.c.b16 %v1297, %v1295
        %v1340 = vpack.c.b16 %v1300, %v1298
        %v1341 = vpack.c.b16 %v1301, %v1299
        %v1342 = vpack.c.b16 %v1304, %v1302
        %v1343 = vpack.c.b16 %v1305, %v1303
        %v1344 = vpack.c.b16 %v1308, %v1306
        %v1345 = vpack.c.b16 %v1309, %v1307
        %v1346 = vpack.c.b16 %v1312, %v1310
        %v1347 = vpack.c.b16 %v1313, %v1311
        %v1348 = vpack.c.b16 %v1316, %v1314
        %v1349 = vpack.c.b16 %v1317, %v1315
        %1382 = vmatprep.subr.bf16.mxu0 %v1319
        %1383 = vmatpush1.bf16.msra.mxu0 %v1318
        %1384 = vmatprep.subr.bf16.mxu0 %v1321
        %1385 = vmatpush1.bf16.msra.mxu0 %v1320
        %1386 = vmatprep.subr.bf16.mxu0 %v1323
        %1387 = vmatpush1.bf16.msra.mxu0 %v1322
        %1388 = vmatprep.subr.bf16.mxu0 %v1325
        %1389 = vmatpush1.bf16.msra.mxu0 %v1324
        %1390 = vmatprep.subr.bf16.mxu0 %v1327
        %1391 = vmatpush1.bf16.msra.mxu0 %v1326
        %1392 = vmatprep.subr.bf16.mxu0 %v1329
        %1393 = vmatpush1.bf16.msra.mxu0 %v1328
        %1394 = vmatprep.subr.bf16.mxu0 %v1331
        %1395 = vmatpush1.bf16.msra.mxu0 %v1330
        %1396 = vmatprep.subr.bf16.mxu0 %v1333
        %1397 = vmatpush1.bf16.msra.mxu0 %v1332
        %1398 = vmatprep.subr.bf16.mxu0 %v1335
        %1399 = vmatpush1.bf16.msra.mxu0 %v1334
        %1400 = vmatprep.subr.bf16.mxu0 %v1337
        %1401 = vmatpush1.bf16.msra.mxu0 %v1336
        %1402 = vmatprep.subr.bf16.mxu0 %v1339
        %1403 = vmatpush1.bf16.msra.mxu0 %v1338
        %1404 = vmatprep.subr.bf16.mxu0 %v1341
        %1405 = vmatpush1.bf16.msra.mxu0 %v1340
        %1406 = vmatprep.subr.bf16.mxu0 %v1343
        %1407 = vmatpush1.bf16.msra.mxu0 %v1342
        %1408 = vmatprep.subr.bf16.mxu0 %v1345
        %1409 = vmatpush1.bf16.msra.mxu0 %v1344
        %1410 = vmatprep.subr.bf16.mxu0 %v1347
        %1411 = vmatpush1.bf16.msra.mxu0 %v1346
        %1412 = vmatprep.subr.bf16.mxu0 %v1349
        %1413 = vmatpush1.bf16.msra.mxu0 %v1348
        %1414 = vmatprep.mubr.bf16.mxu0 %v1188
        %1415 = vmatmul.mubr.bf16.gmra.mrb[0].mxu0 %v1187
        %v1416 = vpop.f32.mrb[0].mxu0
        %v1417 = vadd.f32 0.0, %v1416
        %v1418 = vpop.f32.mrb[0].mxu0
        %v1419 = vadd.f32 0.0, %v1418
        %v1420 = vpop.f32.mrb[0].mxu0
        %v1421 = vadd.f32 0.0, %v1420
        %v1422 = vpop.f32.mrb[0].mxu0
        %v1423 = vadd.f32 0.0, %v1422
        %1424 = vdwg.mxu0
        %v1425 = vmax.f32 %v1417, 0.0
        %v1426 = vmax.f32 %v1419, 0.0
        %v1427 = vmax.f32 %v1421, 0.0
        %v1428 = vmax.f32 %v1423, 0.0
        %v1429 = vpack.c.bf16 %v1427, %v1425
        %v1430 = vpack.c.bf16 %v1428, %v1426
        %1431 = vmatprep.subr.bf16.mxu0 %v1430
        %1432 = vmatpush1.bf16.msra.mxu0 %v1429
        %1433 = vmatprep.subr.bf16.mxu0 0
        %1434 = vmatpush1.bf16.msra.mxu0 0
        %1435 = vmatprep.subr.bf16.mxu0 0
        %1436 = vmatpush1.bf16.msra.mxu0 0
        %1437 = vmatprep.subr.bf16.mxu0 0
        %1438 = vmatpush1.bf16.msra.mxu0 0
        %1439 = vmatprep.subr.bf16.mxu0 0
        %1440 = vmatpush1.bf16.msra.mxu0 0
        %1441 = vmatprep.subr.bf16.mxu0 0
        %1442 = vmatpush1.bf16.msra.mxu0 0
        %1443 = vmatprep.subr.bf16.mxu0 0
        %1444 = vmatpush1.bf16.msra.mxu0 0
        %1445 = vmatprep.subr.bf16.mxu0 0
        %1446 = vmatpush1.bf16.msra.mxu0 0
        %1447 = vmatprep.subr.bf16.mxu0 0
        %1448 = vmatpush1.bf16.msra.mxu0 0
        %1449 = vmatprep.subr.bf16.mxu0 0
        %1450 = vmatpush1.bf16.msra.mxu0 0
        %1451 = vmatprep.subr.bf16.mxu0 0
        %1452 = vmatpush1.bf16.msra.mxu0 0
        %1453 = vmatprep.subr.bf16.mxu0 0
        %1454 = vmatpush1.bf16.msra.mxu0 0
        %1455 = vmatprep.subr.bf16.mxu0 0
        %1456 = vmatpush1.bf16.msra.mxu0 0
        %1457 = vmatprep.subr.bf16.mxu0 0
        %1458 = vmatpush1.bf16.msra.mxu0 0
        %1459 = vmatprep.subr.bf16.mxu0 0
        %1460 = vmatpush1.bf16.msra.mxu0 0
        %1461 = vmatprep.subr.bf16.mxu0 0
        %1462 = vmatpush1.bf16.msra.mxu0 0
        %1463 = vmatprep.mubr.bf16.mxu0 0
        %1464 = vmatmul.mubr.bf16.gmra.mrb[0].mxu0 %v556
        %v1465 = vpop.f32.mrb[0].mxu0
        %v1466 = vadd.f32 0.0, %v1465
        %v1467 = vpop.f32.mrb[0].mxu0
        %v1468 = vadd.f32 0.0, %v1467
        %v1469 = vpop.f32.mrb[0].mxu0
        %v1470 = vadd.f32 0.0, %v1469
        %v1471 = vpop.f32.mrb[0].mxu0
        %v1472 = vadd.f32 0.0, %v1471
        %1473 = vdwg.mxu0
        %v1474 = vmax.f32 %v1466, 0.0
        %v1475 = vmax.f32 %v1468, 0.0
        %v1476 = vmax.f32 %v1470, 0.0
        %v1477 = vmax.f32 %v1472, 0.0
        %v1478 = vld [vmem:[%s3] sm:$0xff]
        %v1479 = vld [vmem:[%s3 + $0x8] sm:$0xff]
        %v1480 = vld [vmem:[%s3 + $0x10] sm:$0xff]
        %v1481 = vld [vmem:[%s3 + $0x18] sm:$0xff]
        %v1482 = vld [vmem:[%s3 + $0x20] sm:$0xff]
        %v1483 = vld [vmem:[%s3 + $0x28] sm:$0xff]
        %v1484 = vld [vmem:[%s3 + $0x30] sm:$0xff]
        %v1485 = vld [vmem:[%s3 + $0x38] sm:$0xff]
        %v1486 = vld [vmem:[%s3 + $0x40] sm:$0xff]
        %v1487 = vld [vmem:[%s3 + $0x48] sm:$0xff]
        %v1488 = vld [vmem:[%s3 + $0x50] sm:$0xff]
        %v1489 = vld [vmem:[%s3 + $0x58] sm:$0xff]
        %v1490 = vld [vmem:[%s3 + $0x60] sm:$0xff]
        %v1491 = vld [vmem:[%s3 + $0x68] sm:$0xff]
        %v1492 = vld [vmem:[%s3 + $0x70] sm:$0xff]
        %v1493 = vld [vmem:[%s3 + $0x78] sm:$0xff]
        %v1494 = vld [vmem:[%s3 + $0x80] sm:$0xff]
        %v1495 = vld [vmem:[%s3 + $0x88] sm:$0xff]
        %v1496 = vld [vmem:[%s3 + $0x90] sm:$0xff]
        %v1497 = vld [vmem:[%s3 + $0x98] sm:$0xff]
        %v1498 = vld [vmem:[%s3 + $0xa0] sm:$0xff]
        %v1499 = vld [vmem:[%s3 + $0xa8] sm:$0xff]
        %v1500 = vld [vmem:[%s3 + $0xb0] sm:$0xff]
        %v1501 = vld [vmem:[%s3 + $0xb8] sm:$0xff]
        %v1502 = vld [vmem:[%s3 + $0xc0] sm:$0xff]
        %v1503 = vld [vmem:[%s3 + $0xc8] sm:$0xff]
        %v1504 = vld [vmem:[%s3 + $0xd0] sm:$0xff]
        %v1505 = vld [vmem:[%s3 + $0xd8] sm:$0xff]
        %v1506 = vld [vmem:[%s3 + $0xe0] sm:$0xff]
        %v1507 = vld [vmem:[%s3 + $0xe8] sm:$0xff]
        %v1508 = vld [vmem:[%s3 + $0xf0] sm:$0xff]
        %v1509 = vld [vmem:[%s3 + $0xf8] sm:$0xff]
        %1510 = vmatprep.subr.mxu0 0.0
        %1511 = vmatpush1.msra.mxu0 %v1478
        %1512 = vmatprep.subr.mxu0 0.0
        %1513 = vmatpush1.msra.mxu0 %v1479
        %1514 = vmatprep.subr.mxu0 0.0
        %1515 = vmatpush1.msra.mxu0 %v1480
        %1516 = vmatprep.subr.mxu0 0.0
        %1517 = vmatpush1.msra.mxu0 %v1481
        %1518 = vmatprep.subr.mxu0 0.0
        %1519 = vmatpush1.msra.mxu0 %v1482
        %1520 = vmatprep.subr.mxu0 0.0
        %1521 = vmatpush1.msra.mxu0 %v1483
        %1522 = vmatprep.subr.mxu0 0.0
        %1523 = vmatpush1.msra.mxu0 %v1484
        %1524 = vmatprep.subr.mxu0 0.0
        %1525 = vmatpush1.msra.mxu0 %v1485
        %1526 = vmatprep.subr.mxu0 0.0
        %1527 = vmatpush1.msra.mxu0 %v1486
        %1528 = vmatprep.subr.mxu0 0.0
        %1529 = vmatpush1.msra.mxu0 %v1487
        %1530 = vmatprep.subr.mxu0 0.0
        %1531 = vmatpush1.msra.mxu0 %v1488
        %1532 = vmatprep.subr.mxu0 0.0
        %1533 = vmatpush1.msra.mxu0 %v1489
        %1534 = vmatprep.subr.mxu0 0.0
        %1535 = vmatpush1.msra.mxu0 %v1490
        %1536 = vmatprep.subr.mxu0 0.0
        %1537 = vmatpush1.msra.mxu0 %v1491
        %1538 = vmatprep.subr.mxu0 0.0
        %1539 = vmatpush1.msra.mxu0 %v1492
        %1540 = vmatprep.subr.mxu0 0.0
        %1541 = vmatpush1.msra.mxu0 %v1493
        %1542 = vmatprep.subr.mxu0 0.0
        %1543 = vmatpush1.msra.mxu0 %v1494
        %1544 = vmatprep.subr.mxu0 0.0
        %1545 = vmatpush1.msra.mxu0 %v1495
        %1546 = vmatprep.subr.mxu0 0.0
        %1547 = vmatpush1.msra.mxu0 %v1496
        %1548 = vmatprep.subr.mxu0 0.0
        %1549 = vmatpush1.msra.mxu0 %v1497
        %1550 = vmatprep.subr.mxu0 0.0
        %1551 = vmatpush1.msra.mxu0 %v1498
        %1552 = vmatprep.subr.mxu0 0.0
        %1553 = vmatpush1.msra.mxu0 %v1499
        %1554 = vmatprep.subr.mxu0 0.0
        %1555 = vmatpush1.msra.mxu0 %v1500
        %1556 = vmatprep.subr.mxu0 0.0
        %1557 = vmatpush1.msra.mxu0 %v1501
        %1558 = vmatprep.subr.mxu0 0.0
        %1559 = vmatpush1.msra.mxu0 %v1502
        %1560 = vmatprep.subr.mxu0 0.0
        %1561 = vmatpush1.msra.mxu0 %v1503
        %1562 = vmatprep.subr.mxu0 0.0
        %1563 = vmatpush1.msra.mxu0 %v1504
        %1564 = vmatprep.subr.mxu0 0.0
        %1565 = vmatpush1.msra.mxu0 %v1505
        %1566 = vmatprep.subr.mxu0 0.0
        %1567 = vmatpush1.msra.mxu0 %v1506
        %1568 = vmatprep.subr.mxu0 0.0
        %1569 = vmatpush1.msra.mxu0 %v1507
        %1570 = vmatprep.subr.mxu0 0.0
        %1571 = vmatpush1.msra.mxu0 %v1508
        %1572 = vmatprep.subr.mxu0 0.0
        %1573 = vmatpush1.msra.mxu0 %v1509
        %1574 = vmatprep.mubr.f32.mxu0 %v1475
        %1575 = vmatmul.mubr.f32.gmra.mrb[0].mxu0 %v1474
        %v1576 = vpop.f32.mrb[0].mxu0
        %v1577 = vadd.f32 0.0, %v1576
        %v1578 = vpop.f32.mrb[0].mxu0
        %1579 = vdwg.mxu0
        %1580 = vmatprep.subr.mxu0 0.0
        %1581 = vmatpush1.msra.mxu0 %v1478
        %1582 = vmatprep.subr.mxu0 0.0
        %1583 = vmatpush1.msra.mxu0 %v1479
        %1584 = vmatprep.subr.mxu0 0.0
        %1585 = vmatpush1.msra.mxu0 %v1480
        %1586 = vmatprep.subr.mxu0 0.0
        %1587 = vmatpush1.msra.mxu0 %v1481
        %1588 = vmatprep.subr.mxu0 0.0
        %1589 = vmatpush1.msra.mxu0 %v1482
        %1590 = vmatprep.subr.mxu0 0.0
        %1591 = vmatpush1.msra.mxu0 %v1483
        %1592 = vmatprep.subr.mxu0 0.0
        %1593 = vmatpush1.msra.mxu0 %v1484
        %1594 = vmatprep.subr.mxu0 0.0
        %1595 = vmatpush1.msra.mxu0 %v1485
        %1596 = vmatprep.subr.mxu0 0.0
        %1597 = vmatpush1.msra.mxu0 %v1486
        %1598 = vmatprep.subr.mxu0 0.0
        %1599 = vmatpush1.msra.mxu0 %v1487
        %1600 = vmatprep.subr.mxu0 0.0
        %1601 = vmatpush1.msra.mxu0 %v1488
        %1602 = vmatprep.subr.mxu0 0.0
        %1603 = vmatpush1.msra.mxu0 %v1489
        %1604 = vmatprep.subr.mxu0 0.0
        %1605 = vmatpush1.msra.mxu0 %v1490
        %1606 = vmatprep.subr.mxu0 0.0
        %1607 = vmatpush1.msra.mxu0 %v1491
        %1608 = vmatprep.subr.mxu0 0.0
        %1609 = vmatpush1.msra.mxu0 %v1492
        %1610 = vmatprep.subr.mxu0 0.0
        %1611 = vmatpush1.msra.mxu0 %v1493
        %1612 = vmatprep.subr.mxu0 0.0
        %1613 = vmatpush1.msra.mxu0 %v1494
        %1614 = vmatprep.subr.mxu0 0.0
        %1615 = vmatpush1.msra.mxu0 %v1495
        %1616 = vmatprep.subr.mxu0 0.0
        %1617 = vmatpush1.msra.mxu0 %v1496
        %1618 = vmatprep.subr.mxu0 0.0
        %1619 = vmatpush1.msra.mxu0 %v1497
        %1620 = vmatprep.subr.mxu0 0.0
        %1621 = vmatpush1.msra.mxu0 %v1498
        %1622 = vmatprep.subr.mxu0 0.0
        %1623 = vmatpush1.msra.mxu0 %v1499
        %1624 = vmatprep.subr.mxu0 0.0
        %1625 = vmatpush1.msra.mxu0 %v1500
        %1626 = vmatprep.subr.mxu0 0.0
        %1627 = vmatpush1.msra.mxu0 %v1501
        %1628 = vmatprep.subr.mxu0 0.0
        %1629 = vmatpush1.msra.mxu0 %v1502
        %1630 = vmatprep.subr.mxu0 0.0
        %1631 = vmatpush1.msra.mxu0 %v1503
        %1632 = vmatprep.subr.mxu0 0.0
        %1633 = vmatpush1.msra.mxu0 %v1504
        %1634 = vmatprep.subr.mxu0 0.0
        %1635 = vmatpush1.msra.mxu0 %v1505
        %1636 = vmatprep.subr.mxu0 0.0
        %1637 = vmatpush1.msra.mxu0 %v1506
        %1638 = vmatprep.subr.mxu0 0.0
        %1639 = vmatpush1.msra.mxu0 %v1507
        %1640 = vmatprep.subr.mxu0 0.0
        %1641 = vmatpush1.msra.mxu0 %v1508
        %1642 = vmatprep.subr.mxu0 0.0
        %1643 = vmatpush1.msra.mxu0 %v1509
        %1644 = vmatprep.mubr.f32.mxu0 %v1477
        %1645 = vmatmul.mubr.f32.gmra.mrb[0].mxu0 %v1476
        %v1646 = vpop.f32.mrb[0].mxu0
        %v1647 = vadd.f32 0.0, %v1646
        %v1648 = vpop.f32.mrb[0].mxu0
        %1649 = vdwg.mxu0
        %v1651 = vcombine.high %v1577, %v1577
        %v1653 = vunpack.c.l.s4 1966171168
        %v1654 = vunpack.c.0.s8 %v1653
        %v1655 = vlaneseq
        %v1656 = vshrl.u32 %v1655, 7
        %v1657 = vsub.s32 %v1654, %v1656
        %v1658 = vrot.slane %v1577, %v1657
        %v1660 = vunpack.c.l.s4 1966171168
        %v1661 = vunpack.c.0.s8 %v1660
        %v1662 = vlaneseq
        %v1663 = vshrl.u32 %v1662, 7
        %v1664 = vsub.s32 %v1661, %v1663
        %v1665 = vrot.slane %v1651, %v1664
        %v1666 = vcombine.high %v1658, %v1658
        %v1667 = vcombine.high %v1665, %v1665
        %v1669 = vunpack.c.l.s4 1966171168
        %v1670 = vunpack.c.0.s8 %v1669
        %v1671 = vlaneseq
        %v1672 = vshrl.u32 %v1671, 7
        %v1673 = vsub.s32 %v1670, %v1672
        %v1674 = vrot.slane %v1658, %v1673
        %v1676 = vunpack.c.l.s4 1966171168
        %v1677 = vunpack.c.0.s8 %v1676
        %v1678 = vlaneseq
        %v1679 = vshrl.u32 %v1678, 7
        %v1680 = vsub.s32 %v1677, %v1679
        %v1681 = vrot.slane %v1665, %v1680
        %v1683 = vunpack.c.l.s4 1966171168
        %v1684 = vunpack.c.0.s8 %v1683
        %v1685 = vlaneseq
        %v1686 = vshrl.u32 %v1685, 7
        %v1687 = vsub.s32 %v1684, %v1686
        %v1688 = vrot.slane %v1666, %v1687
        %v1690 = vunpack.c.l.s4 1966171168
        %v1691 = vunpack.c.0.s8 %v1690
        %v1692 = vlaneseq
        %v1693 = vshrl.u32 %v1692, 7
        %v1694 = vsub.s32 %v1691, %v1693
        %v1695 = vrot.slane %v1667, %v1694
        %v1696 = vcombine.high %v1674, %v1674
        %v1697 = vcombine.high %v1681, %v1681
        %v1698 = vcombine.high %v1688, %v1688
        %v1699 = vcombine.high %v1695, %v1695
        %v1700 = vlaneseq
        %v1701 = vshrl.u32 %v1700, 7
        %v1702 = vsub.s32 0, %v1701
        %v1703 = vrot.slane %v1674, %v1702
        %v1704 = vlaneseq
        %v1705 = vshrl.u32 %v1704, 7
        %v1706 = vsub.s32 0, %v1705
        %v1707 = vrot.slane %v1688, %v1706
        %v1708 = vlaneseq
        %v1709 = vshrl.u32 %v1708, 7
        %v1710 = vsub.s32 0, %v1709
        %v1711 = vrot.slane %v1696, %v1710
        %v1712 = vlaneseq
        %v1713 = vshrl.u32 %v1712, 7
        %v1714 = vsub.s32 0, %v1713
        %v1715 = vrot.slane %v1698, %v1714
        %v1716 = vlaneseq
        %v1717 = vshrl.u32 %v1716, 7
        %v1718 = vsub.s32 0, %v1717
        %v1719 = vrot.slane %v1681, %v1718
        %v1720 = vlaneseq
        %v1721 = vshrl.u32 %v1720, 7
        %v1722 = vsub.s32 0, %v1721
        %v1723 = vrot.slane %v1695, %v1722
        %v1724 = vlaneseq
        %v1725 = vshrl.u32 %v1724, 7
        %v1726 = vsub.s32 0, %v1725
        %v1727 = vrot.slane %v1697, %v1726
        %v1728 = vlaneseq
        %v1729 = vshrl.u32 %v1728, 7
        %v1730 = vsub.s32 0, %v1729
        %v1731 = vrot.slane %v1699, %v1730
        %v1740 = vsub.f32 %v1647, %v1703
        %v1741 = vsub.f32 %v1647, %v1707
        %v1742 = vsub.f32 %v1647, %v1711
        %v1743 = vsub.f32 %v1647, %v1715
        %v1744 = vsub.f32 %v1647, %v1719
        %v1745 = vsub.f32 %v1647, %v1723
        %v1746 = vsub.f32 %v1647, %v1727
        %v1747 = vsub.f32 %v1647, %v1731
        %v1748 = vld [vmem:[%s4] sm:$0x1]
        %v1750 = vlaneseq
        %v1751 = vshrl.u32 %v1750, 7
        %v1752 = vsub.s32 0, %v1751
        %v1753 = vrot.slane %v1748, %v1752
        %v1755 = vadd.f32 %v1740, %v1753
        %v1756 = vadd.f32 %v1741, %v1753
        %v1757 = vadd.f32 %v1742, %v1753
        %v1758 = vadd.f32 %v1743, %v1753
        %v1759 = vadd.f32 %v1744, %v1753
        %v1760 = vadd.f32 %v1745, %v1753
        %v1761 = vadd.f32 %v1746, %v1753
        %v1762 = vadd.f32 %v1747, %v1753
        %v1763 = vmax.f32 %v1755, 0.0
        %v1764 = vmax.f32 %v1756, 0.0
        %v1765 = vmax.f32 %v1757, 0.0
        %v1766 = vmax.f32 %v1758, 0.0
        %v1767 = vmax.f32 %v1759, 0.0
        %v1768 = vmax.f32 %v1760, 0.0
        %v1769 = vmax.f32 %v1761, 0.0
        %v1770 = vmax.f32 %v1762, 0.0
        %v1771 = vld [vmem:[%s5] sm:$0x1]
        %v1773 = vlaneseq
        %v1774 = vshrl.u32 %v1773, 7
        %v1775 = vsub.s32 0, %v1774
        %v1776 = vrot.slane %v1771, %v1775
        %v1778 = vmul.f32 %v1763, %v1776
        %v1779 = vmul.f32 %v1764, %v1776
        %v1780 = vmul.f32 %v1765, %v1776
        %v1781 = vmul.f32 %v1766, %v1776
        %v1782 = vmul.f32 %v1767, %v1776
        %v1783 = vmul.f32 %v1768, %v1776
        %v1784 = vmul.f32 %v1769, %v1776
        %v1785 = vmul.f32 %v1770, %v1776
        %1786 = vadd.xlane.f32.xlu0 %v1778
        %v1787 = vpop.xlane.xlu0 %1786
        %1788 = vadd.xlane.f32.xlu0 %v1779
        %v1789 = vpop.xlane.xlu0 %1788
        %1790 = vadd.xlane.f32.xlu0 %v1780
        %v1791 = vpop.xlane.xlu0 %1790
        %1792 = vadd.xlane.f32.xlu0 %v1781
        %v1793 = vpop.xlane.xlu0 %1792
        %1794 = vadd.xlane.f32.xlu0 %v1782
        %v1795 = vpop.xlane.xlu0 %1794
        %1796 = vadd.xlane.f32.xlu0 %v1783
        %v1797 = vpop.xlane.xlu0 %1796
        %1798 = vadd.xlane.f32.xlu0 %v1784
        %v1799 = vpop.xlane.xlu0 %1798
        %1800 = vadd.xlane.f32.xlu0 %v1785
        %v1801 = vpop.xlane.xlu0 %1800
        %v1802 = vld [vmem:[#allocation2] sm:$0x1]
        %s1803 = vtos %v1802
        %v1804 = vstv %s1803
        %v1805 = vadd.f32 %v1787, %v1804
        %v1806 = vadd.f32 %v1789, %v1804
        %v1807 = vadd.f32 %v1791, %v1804
        %v1808 = vadd.f32 %v1793, %v1804
        %v1809 = vadd.f32 %v1795, %v1804
        %v1810 = vadd.f32 %v1797, %v1804
        %v1811 = vadd.f32 %v1799, %v1804
        %v1812 = vadd.f32 %v1801, %v1804
        %v1821 = vlaneseq
        %v1822 = vand.u32 %v1821, 127
        %v1823 = vlaneseq
        %v1824 = vshrl.u32 %v1823, 7
        %v1825 = vsub.s32 %v1822, %v1824
        %v1826 = vrot.slane %v1805, %v1825
        %v1827 = vlaneseq
        %v1828 = vshrl.u32 %v1827, 7
        %v1829 = vsub.s32 %v1822, %v1828
        %v1830 = vrot.slane %v1806, %v1829
        %v1831 = vlaneseq
        %v1832 = vshrl.u32 %v1831, 7
        %v1833 = vsub.s32 %v1822, %v1832
        %v1834 = vrot.slane %v1807, %v1833
        %v1835 = vlaneseq
        %v1836 = vshrl.u32 %v1835, 7
        %v1837 = vsub.s32 %v1822, %v1836
        %v1838 = vrot.slane %v1808, %v1837
        %v1839 = vlaneseq
        %v1840 = vshrl.u32 %v1839, 7
        %v1841 = vsub.s32 %v1822, %v1840
        %v1842 = vrot.slane %v1809, %v1841
        %v1843 = vlaneseq
        %v1844 = vshrl.u32 %v1843, 7
        %v1845 = vsub.s32 %v1822, %v1844
        %v1846 = vrot.slane %v1810, %v1845
        %v1847 = vlaneseq
        %v1848 = vshrl.u32 %v1847, 7
        %v1849 = vsub.s32 %v1822, %v1848
        %v1850 = vrot.slane %v1811, %v1849
        %v1851 = vlaneseq
        %v1852 = vshrl.u32 %v1851, 7
        %v1853 = vsub.s32 %v1822, %v1852
        %v1854 = vrot.slane %v1812, %v1853
        %vm1855 = vcmask 1041409
        %v1856 = vsel %vm1855, %v1830, %v1826
        %vm1857 = vcmask 1042434
        %v1858 = vsel %vm1857, %v1834, %v1856
        %vm1859 = vcmask 1043459
        %v1860 = vsel %vm1859, %v1838, %v1858
        %vm1861 = vcmask 1044484
        %v1862 = vsel %vm1861, %v1842, %v1860
        %vm1863 = vcmask 1045509
        %v1864 = vsel %vm1863, %v1846, %v1862
        %vm1865 = vcmask 1046534
        %v1866 = vsel %vm1865, %v1850, %v1864
        %vm1867 = vcmask 1047559
        %v1868 = vsel %vm1867, %v1854, %v1866
        %vm1870 = vcmask 64512
        %1871 = vst.msk [vmem:[%s288] sm:$0xff] %vm1870, %v1868
        %s1872 = sand.u32 %s188, 1
        %s1873 = scalar_lea.sflag [#allocation4], %s1872
        %s1874 = sand.u32 %s188, 1
        %s1875 = smul.addr %s1874, 8
        %s1876 = scalar_lea.vmem [#allocation3], %s1875
        // Predicated region
        $region49: #{message_passing_op_forward.1} parent=47 // pred_check
          %p1877 = pneg %p198
        $region50: #{message_passing_op_forward.1} parent=47 // pred_check_branch
          %1879 = sbr.rel (%p1877) target = $region52
        $region51: #{message_passing_op_forward.1} parent=47 // pred_region
          %s1881 = ssub.s32 128, 128
          %1882 = vsyncadd %s1873, %s1881
          %s1883 = smul.addr %s23, 128
          %s1884 = scalar_lea.hbm %s7, %s1883
          %s1886 = sshll.u32 %s1876, 4
          %s1887 = int_to_ptr.vmem [resolvable:$true] %s1886
          %1889 = dma.vmem_to_hbm [thread:$0]  %s1887, 128, %s1884, %s1873
        $region52: #{message_passing_op_forward.1} parent=47 // pred_fallthru
          _
      $region48: #{message_passing_op_forward.1} parent=5 // pred_fallthru
        _
      %p1890 = scmp.le.s32.totalorder 2, %s18
      // Predicated region
      $region53: #{message_passing_op_forward.1} parent=5 // pred_check
        %p1891 = pneg %p1890
      $region54: #{message_passing_op_forward.1} parent=5 // pred_check_branch
        %1893 = sbr.rel (%p1891) target = $region56
      $region55: #{message_passing_op_forward.1} parent=5 // pred_region
        %s1894 = ssub.s32 %s18, 2
        // Predicated region
        $region57: #{message_passing_op_forward.1} parent=55 // pred_check
          %p1895 = pneg %p204
        $region58: #{message_passing_op_forward.1} parent=55 // pred_check_branch
          %1897 = sbr.rel (%p1895) target = $region60
        $region59: #{message_passing_op_forward.1} parent=55 // pred_region
          %s1898 = sand.u32 %s189, 1
          %s1899 = scalar_lea.sflag [#allocation4], %s1898
          %s1900 = sand.u32 %s189, 1
          %s1901 = smul.addr %s1900, 8
          %s1902 = scalar_lea.vmem [#allocation3], %s1901
          %1903 = dma.done %s1899, 128
        $region60: #{message_passing_op_forward.1} parent=55 // pred_fallthru
          _
      $region56: #{message_passing_op_forward.1} parent=5 // pred_fallthru
        _
    $region6: #{message_passing_op_forward.1} parent=1 // loop_footer
      %s22 = sadd.s32 1, %s18
    $region7: #{message_passing_op_forward.1} parent=1 // loop_footer_branch
      %17 = sbr.rel target = $region3
    $region8: #{message_passing_op_forward.1} parent=1 // loop_exit
      _
    %1904 = vsyncpa [#allocation4], 1
    %s1905 = scalar_lea.sflag [#allocation4], 1
    %1906 = vsyncpa %s1905, 1

</llo_original>
